<compile_context>
chip_gen: v6e
topology: v6e:2x2x1
jax: 0.10.0
libtpu: 0.0.40
codegen_flags: <defaults>
</compile_context>

<pallas_src>
import numpy as np
import jax
import jax.numpy as jnp
from jax import lax
from jax.experimental import pallas as pl
from jax.experimental.pallas import tpu as pltpu

# ---------------- small, module-consistent hyper-parameters ----------------
BATCH = 2
SEQ = 8
HIDDEN = 32            # `hidden` (PyTorch default 256) -- kept small
META_DIM = 8           # hardcoded in ModelMS2Transformer
NLAYERS = 2            # `nlayers` (PyTorch default 4) -- kept small
NHEADS = 8             # hardcoded in building_block.Hidden_Transformer
HEAD_DIM = HIDDEN // NHEADS
FF_DIM = 4 * HIDDEN    # hidden_expand = 4
MOD_FEATURE_SIZE = 14  # synthetic mod-feature size (real peptdeep: 109)
MOD_HIDDEN = 8         # Input_26AA_Mod_PositionalEncoding mod_hidden
MOD_FIX_K = 6          # Mod_Embedding_FixFirstK.k
AA_VOCAB = 27          # 26 AAs + padding idx 0
MAX_INSTRUMENT = 8     # building_block.max_instrument_num
NUM_FRAG_TYPES = 8
NUM_MODLOSS_TYPES = 2
MASK_MODLOSS = True
NUM_NON_MODLOSS = NUM_FRAG_TYPES - NUM_MODLOSS_TYPES   # 6
OUT_COLS = NUM_FRAG_TYPES if (NUM_MODLOSS_TYPES > 0 and MASK_MODLOSS) else NUM_NON_MODLOSS
DEC_HIDDEN = 64        # Decoder_Linear hidden
LN_EPS = 1e-5

SLAB_LANES = 128       # lane width of the packed weight slabs
OUT_PAD = 128          # lane-dense kernel output; wrapper slices [..., :OUT_COLS]


# ---------------------- static weight-slab layout ---------------------------
def _bf16_entries():
    """(name, (rows, cols)) for the bf16 matmul-weight slab."""
    ents = []
    for l in range(NLAYERS):
        ents += [(f"wqkv{l}", (HIDDEN, 3 * HIDDEN)),
                 (f"wo{l}",   (HIDDEN, HIDDEN)),
                 (f"w1{l}",   (HIDDEN, FF_DIM)),
                 (f"w2{l}",   (FF_DIM, HIDDEN))]
    ents += [("wd1",  (HIDDEN, DEC_HIDDEN)),
             ("wd2p", (DEC_HIDDEN, OUT_PAD)),     # modloss + lane padding fused in
             ("rep",  (SEQ * NHEADS, SEQ))]       # 0/1 row-replication matrix
    return ents


def _f32_entries():
    """(name, (rows, cols)) for the f32 bias / LN / mask slab."""
    ents = []
    for l in range(NLAYERS):
        ents += [(f"bqkv{l}", (1, 3 * HIDDEN)), (f"bo{l}",  (1, HIDDEN)),
                 (f"ln1w{l}", (1, HIDDEN)),     (f"ln1b{l}", (1, HIDDEN)),
                 (f"b1{l}",   (1, FF_DIM)),     (f"b2{l}",   (1, HIDDEN)),
                 (f"ln2w{l}", (1, HIDDEN)),     (f"ln2b{l}", (1, HIDDEN))]
    ents += [("bd1",  (1, DEC_HIDDEN)),
             ("bd2p", (1, OUT_PAD)),
             ("prelu", (1, 1)),
             ("gex",  (SEQ * NHEADS, HIDDEN))]   # 0/1 head-indicator mask
    return ents


def _layout(entries):
    """Row offsets inside a (rows, SLAB_LANES) slab; multi-row blocks are
    aligned to 8 sublanes so static slices never cross a (8,128) tile edge."""
    layout, row = {}, 0
    for name, (r, c) in entries:
        assert c <= SLAB_LANES
        if r > 1 and row % 8:
            row += 8 - row % 8
        layout[name] = (row, r, c)
        row += r
    total = ((row + 7) // 8) * 8
    return layout, total


_BF16_LAYOUT, _BF16_ROWS = _layout(_bf16_entries())
_F32_LAYOUT, _F32_ROWS = _layout(_f32_entries())


# ---------------------------- Pallas kernel --------------------------------
def _mm(a, b):
    """bf16 x bf16 MXU matmul with f32 accumulation."""
    return jnp.dot(a.astype(jnp.bfloat16), b.astype(jnp.bfloat16),
                   preferred_element_type=jnp.float32)


def _mm_nt(a, b):
    """a @ b.T (contract minor dims), bf16 operands, f32 accumulation."""
    return lax.dot_general(a.astype(jnp.bfloat16), b.astype(jnp.bfloat16),
                           (((1,), (1,)), ((), ())),
                           preferred_element_type=jnp.float32)


def _ln(x, w, b):
    # E[x^2] - mu^2: the two cross-lane reductions can issue back-to-back.
    mu = jnp.mean(x, axis=-1, keepdims=True)
    var = jnp.mean(x * x, axis=-1, keepdims=True) - mu * mu
    return (x - mu) * lax.rsqrt(var + LN_EPS) * w + b


def ms2_hidden_kernel(x_ref, wslab_ref, pslab_ref, out_ref):
    """One sequence per program (batch is on the grid).  x_ref: (S, H)."""

    def W(name):                                   # bf16 matmul weights
        r0, r, c = _BF16_LAYOUT[name]
        return wslab_ref[r0:r0 + r, 0:c]

    def P(name):                                   # f32 biases / norms / masks
        r0, r, c = _F32_LAYOUT[name]
        return pslab_ref[r0:r0 + r, 0:c]

    x_in = x_ref[...]                              # (S, H), f32
    gex = P("gex")                                 # (S*NH, H) head-indicator
    rep = W("rep")                                 # (S*NH, S) row replication
    scale = 1.0 / float(np.sqrt(HEAD_DIM))

    # TODO(synk): at production HIDDEN=256 benchmark this Gex full-width
    # formulation against a heads-as-batch lax.dot_general (dh-contraction).
    x = x_in
    for l in range(NLAYERS):
        # fused QKV projection: one MXU op per layer
        qkv = _mm(x, W(f"wqkv{l}")) + P(f"bqkv{l}")            # (S, 3H)
        q = qkv[:, 0 * HIDDEN:1 * HIDDEN]
        k = qkv[:, 1 * HIDDEN:2 * HIDDEN]
        v = qkv[:, 2 * HIDDEN:3 * HIDDEN]

        # rows = (query i, head h); masking the replicated q by the head
        # indicator makes the full-H contraction equal the per-head one.
        q_rep = _mm(rep, q)                                     # (S*NH, H)
        s = _mm_nt(q_rep * gex, k) * scale                      # (S*NH, S)
        s = s - jnp.max(s, axis=-1, keepdims=True)
        e = jnp.exp(s)
        p = e / jnp.sum(e, axis=-1, keepdims=True)              # exact divide

        w_ctx = _mm(p, v)                                       # (S*NH, H)
        # keep only own-head lanes, then collapse each NH row-group (sublane
        # reduction on the XLU) -> concat-head layout (S, H).
        ctx = jnp.sum((w_ctx * gex).reshape(SEQ, NHEADS, HIDDEN), axis=1)

        attn = _mm(ctx, W(f"wo{l}")) + P(f"bo{l}")
        x = _ln(x + attn, P(f"ln1w{l}"), P(f"ln1b{l}"))
        ff = jnp.maximum(_mm(x, W(f"w1{l}")) + P(f"b1{l}"), 0.0)
        ff = _mm(ff, W(f"w2{l}")) + P(f"b2{l}")
        x = _ln(x + ff, P(f"ln2w{l}"), P(f"ln2b{l}"))

    # hidden_x = hidden_nn(in_x) + in_x * 0.2   (dropout == identity, eval)
    hidden_x = x + x_in * 0.2

    # output_nn = Decoder_Linear: Linear(H,64) -> PReLU -> Linear(64, OUT_PAD)
    # (wd2p/bd2p zero-padded: masked modloss cols are exact zeros, rest is
    # lane padding sliced off by the wrapper -> lane-dense vst)
    h1 = _mm(hidden_x, W("wd1")) + P("bd1")
    alpha = P("prelu")
    h1 = jnp.where(h1 >= 0, h1, alpha * h1)
    out_ref[...] = _mm(h1, W("wd2p")) + P("bd2p")               # (S, OUT_PAD)


# ------------------------- host-side weight packing -------------------------
def _pack_slabs(params):
    """Pack all transformer/decoder weights into two contiguous lane-dense
    slabs (one DMA each instead of 19 tiny ones).  Traceable (jnp ops only)."""
    vals = {}
    for l in range(NLAYERS):
        vals[f"wqkv{l}"] = jnp.concatenate(
            [params["wq"][l], params["wk"][l], params["wv"][l]], axis=-1)
        vals[f"bqkv{l}"] = jnp.concatenate(
            [params["bq"][l], params["bk"][l], params["bv"][l]], axis=-1)
        vals[f"wo{l}"] = params["wo"][l];  vals[f"bo{l}"] = params["bo"][l]
        vals[f"w1{l}"] = params["w1"][l];  vals[f"b1{l}"] = params["b1"][l]
        vals[f"w2{l}"] = params["w2"][l];  vals[f"b2{l}"] = params["b2"][l]
        vals[f"ln1w{l}"] = params["ln1w"][l]; vals[f"ln1b{l}"] = params["ln1b"][l]
        vals[f"ln2w{l}"] = params["ln2w"][l]; vals[f"ln2b{l}"] = params["ln2b"][l]
    pad = OUT_PAD - NUM_NON_MODLOSS
    vals["wd1"] = params["wd1"]
    vals["bd1"] = params["bd1"]
    vals["wd2p"] = jnp.pad(params["wd2"], ((0, 0), (0, pad)))
    vals["bd2p"] = jnp.pad(params["bd2"], ((0, 0), (0, pad)))
    vals["prelu"] = params["prelu"]
    # constants: row replication (each query row repeated NHEADS times) and
    # head-indicator mask (exact 0/1 in bf16/f32)
    vals["rep"] = jnp.asarray(np.repeat(np.eye(SEQ, dtype=np.float32), NHEADS, axis=0))
    head_ind = (np.arange(HIDDEN)[None, :] // HEAD_DIM
                == np.arange(NHEADS)[:, None]).astype(np.float32)
    vals["gex"] = jnp.asarray(np.tile(head_ind, (SEQ, 1)))

    wslab = jnp.zeros((_BF16_ROWS, SLAB_LANES), jnp.bfloat16)
    for name, (r, c) in _bf16_entries():
        r0, _, _ = _BF16_LAYOUT[name]
        wslab = wslab.at[r0:r0 + r, :c].set(vals[name].astype(jnp.bfloat16))
    pslab = jnp.zeros((_F32_ROWS, SLAB_LANES), jnp.float32)
    for name, (r, c) in _f32_entries():
        r0, _, _ = _F32_LAYOUT[name]
        pslab = pslab.at[r0:r0 + r, :c].set(vals[name].astype(jnp.float32))
    return wslab, pslab


def run_hidden_and_decoder(params, in_x):
    B, S, H = in_x.shape
    wslab, pslab = _pack_slabs(params)
    # VMEM budget derived from what is actually resident (+ headroom).
    vmem_bytes = (2 * S * H * 4 + 2 * S * OUT_PAD * 4
                  + 2 * (wslab.size * 2 + pslab.size * 4))
    out = pl.pallas_call(
        ms2_hidden_kernel,
        out_shape=jax.ShapeDtypeStruct((B, S, OUT_PAD), jnp.float32),
        grid=(B,),
        in_specs=[
            pl.BlockSpec((None, S, H), lambda b: (b, 0, 0)),        # per-batch tile
            pl.BlockSpec(wslab.shape, lambda b: (0, 0)),            # whole slab, resident
            pl.BlockSpec(pslab.shape, lambda b: (0, 0)),            # whole slab, resident
        ],
        out_specs=pl.BlockSpec((None, S, OUT_PAD), lambda b: (b, 0, 0)),
        compiler_params=pltpu.CompilerParams(
            dimension_semantics=("parallel",),                      # both TCs on v7x
            vmem_limit_bytes=int(vmem_bytes) + 8 * 1024 * 1024),
    )(in_x, wslab, pslab)
    return out[..., :OUT_COLS]


# ---------------------- JAX glue (front / back end) ------------------------
def _frontend(params, aa_indices, mod_x, charges, NCEs, instrument_indices):
    # TODO(synk): embedding gather / PE / meta one-hot kept in plain JAX; could
    # be fused into the kernel to avoid one HBM round trip of (B,S,H).
    B, S = aa_indices.shape
    # Input_26AA_Mod_PositionalEncoding
    mod_emb = jnp.concatenate(
        [mod_x[..., :MOD_FIX_K], mod_x[..., MOD_FIX_K:] @ params["mod_w"].T],
        axis=-1)                                                   # (B,S,MOD_HIDDEN)
    aa_emb = params["aa_emb"][aa_indices]                          # (B,S,H-16)
    x = jnp.concatenate([aa_emb, mod_emb], axis=-1)                # (B,S,H-META_DIM)
    x = x + params["pe"][None, :S, :]                              # positional enc
    # Meta_Embedding
    inst = jax.nn.one_hot(instrument_indices, MAX_INSTRUMENT, dtype=jnp.float32)
    meta = jnp.concatenate([inst, charges], axis=1) @ params["meta_w"].T + params["meta_b"]
    meta = jnp.concatenate([meta, NCEs], axis=1)                   # (B, META_DIM)
    meta = jnp.broadcast_to(meta[:, None, :], (B, S, META_DIM))
    return jnp.concatenate([x, meta], axis=-1)                     # (B,S,HIDDEN)


def ms2_forward_pallas(params, aa_indices, mod_x, charges, NCEs, instrument_indices):
    in_x = _frontend(params, aa_indices, mod_x, charges, NCEs, instrument_indices)
    out = run_hidden_and_decoder(params, in_x)      # modloss zeros already fused in
    # TODO(synk): mask_modloss=False branch (extra modloss transformer head) not implemented.
    return out[:, 3:, :]


# ------------- pure-JAX reference (independent per-head formulation) -------
def _ln_ref(x, w, b):
    mu = jnp.mean(x, axis=-1, keepdims=True)
    var = jnp.mean((x - mu) ** 2, axis=-1, keepdims=True)
    return (x - mu) * lax.rsqrt(var + LN_EPS) * w + b


def _ref_hidden_and_decoder(params, in_x):
    # Mirrors the module math with the same precision choice as the kernel
    # (bf16 matmul operands, f32 accumulation) so the comparison is tight.
    def mm(a, b):
        return jnp.dot(a.astype(jnp.bfloat16), b.astype(jnp.bfloat16),
                       preferred_element_type=jnp.float32)

    def one(x_in):
        x = x_in
        scale = 1.0 / float(np.sqrt(HEAD_DIM))
        for l in range(NLAYERS):
            q = mm(x, params["wq"][l]) + params["bq"][l]
            k = mm(x, params["wk"][l]) + params["bk"][l]
            v = mm(x, params["wv"][l]) + params["bv"][l]
            heads = []
            for h in range(NHEADS):
                sl = slice(h * HEAD_DIM, (h + 1) * HEAD_DIM)
                s = mm(q[:, sl], k[:, sl].T) * scale
                s = s - s.max(-1, keepdims=True)
                e = jnp.exp(s)
                heads.append(mm(e / e.sum(-1, keepdims=True), v[:, sl]))
            attn = mm(jnp.concatenate(heads, -1), params["wo"][l]) + params["bo"][l]
            x = _ln_ref(x + attn, params["ln1w"][l], params["ln1b"][l])
            ff = jnp.maximum(mm(x, params["w1"][l]) + params["b1"][l], 0.0)
            ff = mm(ff, params["w2"][l]) + params["b2"][l]
            x = _ln_ref(x + ff, params["ln2w"][l], params["ln2b"][l])
        hx = x + x_in * 0.2
        h1 = mm(hx, params["wd1"]) + params["bd1"]
        h1 = jnp.where(h1 >= 0, h1, params["prelu"] * h1)
        return mm(h1, params["wd2"]) + params["bd2"]
    return jax.vmap(one)(in_x)


def ms2_forward_ref(params, aa_indices, mod_x, charges, NCEs, instrument_indices):
    in_x = _frontend(params, aa_indices, mod_x, charges, NCEs, instrument_indices)
    out = _ref_hidden_and_decoder(params, in_x)
    B, S, _ = out.shape
    if NUM_MODLOSS_TYPES > 0 and MASK_MODLOSS:
        out = jnp.concatenate(
            [out, jnp.zeros((B, S, NUM_MODLOSS_TYPES), dtype=out.dtype)], axis=-1)
    return out[:, 3:, :]


# ---------------------------- parameter init -------------------------------
def init_params(key):
    ks = iter(jax.random.split(key, 64))
    nrm = lambda shape, s=0.1: s * jax.random.normal(next(ks), shape, dtype=jnp.float32)
    p = {}
    # Input_26AA_Mod_PositionalEncoding
    aa = nrm((AA_VOCAB, HIDDEN - META_DIM - MOD_HIDDEN))
    p["aa_emb"] = aa.at[0].set(0.0)                                  # padding_idx=0
    p["mod_w"] = nrm((MOD_HIDDEN - MOD_FIX_K, MOD_FEATURE_SIZE - MOD_FIX_K))
    d = HIDDEN - META_DIM
    pos = jnp.arange(200, dtype=jnp.float32)[:, None]
    div = jnp.exp(jnp.arange(0, d, 2, dtype=jnp.float32) * (-np.log(10000.0) / d))
    pe = jnp.zeros((200, d), dtype=jnp.float32)
    pe = pe.at[:, 0::2].set(jnp.sin(pos * div))
    pe = pe.at[:, 1::2].set(jnp.cos(pos * div))
    p["pe"] = pe
    # Meta_Embedding: Linear(max_instrument_num+1, meta_dim-1)
    p["meta_w"] = nrm((META_DIM - 1, MAX_INSTRUMENT + 1))
    p["meta_b"] = nrm((META_DIM - 1,))
    # Hidden_Transformer (stacked over layers; matmul weights stored (in, out))
    L, H, F = NLAYERS, HIDDEN, FF_DIM
    for n, shp in [("wq", (L, H, H)), ("wk", (L, H, H)), ("wv", (L, H, H)),
                   ("bq", (L, 1, H)), ("bk", (L, 1, H)), ("bv", (L, 1, H)),
                   ("wo", (L, H, H)), ("bo", (L, 1, H)),
                   ("w1", (L, H, F)), ("b1", (L, 1, F)),
                   ("w2", (L, F, H)), ("b2", (L, 1, H))]:
        p[n] = nrm(shp)
    p["ln1w"] = jnp.ones((L, 1, H), jnp.float32); p["ln1b"] = jnp.zeros((L, 1, H), jnp.float32)
    p["ln2w"] = jnp.ones((L, 1, H), jnp.float32); p["ln2b"] = jnp.zeros((L, 1, H), jnp.float32)
    # Decoder_Linear (PReLU is PyTorch-default scalar, num_parameters=1)
    p["wd1"] = nrm((H, DEC_HIDDEN)); p["bd1"] = nrm((1, DEC_HIDDEN))
    p["prelu"] = jnp.full((1, 1), 0.25, dtype=jnp.float32)
    p["wd2"] = nrm((DEC_HIDDEN, NUM_NON_MODLOSS)); p["bd2"] = nrm((1, NUM_NON_MODLOSS))
    return p


# --------------------------------- main -------------------------------------
if __name__ == "__main__":
    key = jax.random.PRNGKey(0)
    kp, k1, k2, k3, k4, k5 = jax.random.split(key, 6)
    params = init_params(kp)

    aa_indices = jax.random.randint(k1, (BATCH, SEQ), 0, AA_VOCAB, dtype=jnp.int32)
    mod_x = 0.1 * jax.random.normal(k2, (BATCH, SEQ, MOD_FEATURE_SIZE), dtype=jnp.float32)
    charges = jax.random.uniform(k3, (BATCH, 1), dtype=jnp.float32)      # charge*0.1-style
    NCEs = jax.random.uniform(k4, (BATCH, 1), dtype=jnp.float32)         # NCE*0.01-style
    instrument_indices = jax.random.randint(k5, (BATCH,), 0, MAX_INSTRUMENT, dtype=jnp.int32)

    out = jax.jit(ms2_forward_pallas)(params, aa_indices, mod_x, charges, NCEs,
                                      instrument_indices)
    out = jax.block_until_ready(out)
    assert out.shape == (BATCH, SEQ - 3, NUM_FRAG_TYPES), out.shape

    ref = ms2_forward_ref(params, aa_indices, mod_x, charges, NCEs, instrument_indices)
    # both sides use bf16 MXU operands with f32 accumulation; differences are
    # only accumulation-order / rounding level
    np.testing.assert_allclose(np.asarray(out), np.asarray(ref), rtol=1e-2, atol=1e-2)

    print("KERNEL_OK")
</pallas_src>

<mosaic_0001>
module attributes {stable_mosaic.version = 11 : i64} {
  func.func @ms2_hidden_kernel(%arg0: i32, %arg1: memref<1x8x32xf32, #tpu.memory_space<vmem>>, %arg2: memref<608x128xbf16, #tpu.memory_space<vmem>>, %arg3: memref<88x128xf32, #tpu.memory_space<vmem>>, %arg4: memref<1x8x128xf32, #tpu.memory_space<vmem>>) attributes {dimension_semantics = [#tpu.dimension_semantics<parallel>], iteration_bounds = array<i64: 2>, scalar_prefetch = 0 : i64, scratch_operands = 0 : i64, tpu.core_type = #tpu.core_type<tc>, window_params = [{transform_indices = @transform_0, window_bounds = array<i64: 1, 8, 32>}, {pipeline_mode = #tpu.pipeline_mode<synchronous>, transform_indices = @transform_1, window_bounds = array<i64: 608, 128>}, {pipeline_mode = #tpu.pipeline_mode<synchronous>, transform_indices = @transform_2, window_bounds = array<i64: 88, 128>}, {transform_indices = @transform_3, window_bounds = array<i64: 1, 8, 128>}]} {
    %c0 = arith.constant 0 : index
    %c0_0 = arith.constant 0 : index
    %c0_1 = arith.constant 0 : index
    %0 = vector.load %arg1[%c0, %c0_0, %c0_1] : memref<1x8x32xf32, #tpu.memory_space<vmem>>, vector<1x8x32xf32>
    %1 = vector.shape_cast %0 : vector<1x8x32xf32> to vector<8x32xf32>
    %c24 = arith.constant 24 : index
    %c0_2 = arith.constant 0 : index
    %2 = vector.load %arg3[%c24, %c0_2] : memref<88x128xf32, #tpu.memory_space<vmem>>, vector<64x32xf32>
    %c544 = arith.constant 544 : index
    %c0_3 = arith.constant 0 : index
    %3 = vector.load %arg2[%c544, %c0_3] : memref<608x128xbf16, #tpu.memory_space<vmem>>, vector<64x8xbf16>
    %c0_4 = arith.constant 0 : index
    %c0_5 = arith.constant 0 : index
    %4 = vector.load %arg2[%c0_4, %c0_5] : memref<608x128xbf16, #tpu.memory_space<vmem>>, vector<32x96xbf16>
    %5 = arith.truncf %1 : vector<8x32xf32> to vector<8x32xbf16>
    %cst = arith.constant dense<0.000000e+00> : vector<8x96xf32>
    %6 = tpu.matmul %5, %4, %cst {dimension_numbers = #tpu.dot_dimension_numbers<[1], [0], [0], [1], [0, 0, 1, 1], [], []>} : vector<8x32xbf16>, vector<32x96xbf16>, vector<8x96xf32> -> vector<8x96xf32>
    %c0_6 = arith.constant 0 : index
    %c0_7 = arith.constant 0 : index
    %7 = vector.load %arg3[%c0_6, %c0_7] : memref<88x128xf32, #tpu.memory_space<vmem>>, vector<1x96xf32>
    %8 = vector.broadcast %7 : vector<1x96xf32> to vector<8x96xf32>
    %9 = arith.addf %6, %8 : vector<8x96xf32>
    %10 = vector.extract_strided_slice %9 {offsets = [0, 0], sizes = [8, 32], strides = [1, 1]} : vector<8x96xf32> to vector<8x32xf32>
    %11 = vector.extract_strided_slice %9 {offsets = [0, 32], sizes = [8, 32], strides = [1, 1]} : vector<8x96xf32> to vector<8x32xf32>
    %12 = vector.extract_strided_slice %9 {offsets = [0, 64], sizes = [8, 32], strides = [1, 1]} : vector<8x96xf32> to vector<8x32xf32>
    %13 = arith.truncf %10 : vector<8x32xf32> to vector<8x32xbf16>
    %cst_8 = arith.constant dense<0.000000e+00> : vector<64x32xf32>
    %14 = tpu.matmul %3, %13, %cst_8 {dimension_numbers = #tpu.dot_dimension_numbers<[1], [0], [0], [1], [0, 0, 1, 1], [], []>} : vector<64x8xbf16>, vector<8x32xbf16>, vector<64x32xf32> -> vector<64x32xf32>
    %15 = arith.mulf %14, %2 : vector<64x32xf32>
    %16 = arith.truncf %15 : vector<64x32xf32> to vector<64x32xbf16>
    %17 = arith.truncf %11 : vector<8x32xf32> to vector<8x32xbf16>
    %cst_9 = arith.constant dense<0.000000e+00> : vector<64x8xf32>
    %18 = tpu.matmul %16, %17, %cst_9 {dimension_numbers = #tpu.dot_dimension_numbers<[1], [1], [0], [0], [0, 0, 1, 0], [], []>} : vector<64x32xbf16>, vector<8x32xbf16>, vector<64x8xf32> -> vector<64x8xf32>
    %cst_10 = arith.constant 5.000000e-01 : f32
    %19 = vector.broadcast %cst_10 : f32 to vector<64x8xf32>
    %20 = arith.mulf %18, %19 : vector<64x8xf32>
    %cst_11 = arith.constant dense<0xFF800000> : vector<64xf32>
    %21 = vector.multi_reduction <maximumf>, %20, %cst_11 [1] : vector<64x8xf32> to vector<64xf32>
    %22 = vector.shape_cast %21 : vector<64xf32> to vector<64x1xf32>
    %23 = vector.broadcast %22 : vector<64x1xf32> to vector<64x8xf32>
    %24 = arith.subf %20, %23 : vector<64x8xf32>
    %25 = math.exp %24 : vector<64x8xf32>
    %cst_12 = arith.constant dense<0.000000e+00> : vector<64xf32>
    %26 = vector.multi_reduction <add>, %25, %cst_12 [1] : vector<64x8xf32> to vector<64xf32>
    %27 = vector.shape_cast %26 : vector<64xf32> to vector<64x1xf32>
    %28 = vector.broadcast %27 : vector<64x1xf32> to vector<64x8xf32>
    %29 = arith.divf %25, %28 : vector<64x8xf32>
    %30 = arith.truncf %29 : vector<64x8xf32> to vector<64x8xbf16>
    %31 = arith.truncf %12 : vector<8x32xf32> to vector<8x32xbf16>
    %cst_13 = arith.constant dense<0.000000e+00> : vector<64x32xf32>
    %32 = tpu.matmul %30, %31, %cst_13 {dimension_numbers = #tpu.dot_dimension_numbers<[1], [0], [0], [1], [0, 0, 1, 1], [], []>} : vector<64x8xbf16>, vector<8x32xbf16>, vector<64x32xf32> -> vector<64x32xf32>
    %33 = arith.mulf %32, %2 : vector<64x32xf32>
    %34 = vector.shape_cast %33 : vector<64x32xf32> to vector<8x8x32xf32>
    %cst_14 = arith.constant dense<0.000000e+00> : vector<8x32xf32>
    %35 = vector.multi_reduction <add>, %34, %cst_14 [1] : vector<8x8x32xf32> to vector<8x32xf32>
    %c32 = arith.constant 32 : index
    %c0_15 = arith.constant 0 : index
    %36 = vector.load %arg2[%c32, %c0_15] : memref<608x128xbf16, #tpu.memory_space<vmem>>, vector<32x32xbf16>
    %37 = arith.truncf %35 : vector<8x32xf32> to vector<8x32xbf16>
    %cst_16 = arith.constant dense<0.000000e+00> : vector<8x32xf32>
    %38 = tpu.matmul %37, %36, %cst_16 {dimension_numbers = #tpu.dot_dimension_numbers<[1], [0], [0], [1], [0, 0, 1, 1], [], []>} : vector<8x32xbf16>, vector<32x32xbf16>, vector<8x32xf32> -> vector<8x32xf32>
    %c1 = arith.constant 1 : index
    %c0_17 = arith.constant 0 : index
    %39 = vector.load %arg3[%c1, %c0_17] : memref<88x128xf32, #tpu.memory_space<vmem>>, vector<1x32xf32>
    %40 = vector.broadcast %39 : vector<1x32xf32> to vector<8x32xf32>
    %41 = arith.addf %38, %40 : vector<8x32xf32>
    %42 = arith.addf %1, %41 : vector<8x32xf32>
    %c2 = arith.constant 2 : index
    %c0_18 = arith.constant 0 : index
    %43 = vector.load %arg3[%c2, %c0_18] : memref<88x128xf32, #tpu.memory_space<vmem>>, vector<1x32xf32>
    %c3 = arith.constant 3 : index
    %c0_19 = arith.constant 0 : index
    %44 = vector.load %arg3[%c3, %c0_19] : memref<88x128xf32, #tpu.memory_space<vmem>>, vector<1x32xf32>
    %cst_20 = arith.constant dense<0.000000e+00> : vector<8xf32>
    %45 = vector.multi_reduction <add>, %42, %cst_20 [1] : vector<8x32xf32> to vector<8xf32>
    %46 = vector.shape_cast %45 : vector<8xf32> to vector<8x1xf32>
    %cst_21 = arith.constant 3.200000e+01 : f32
    %47 = vector.broadcast %cst_21 : f32 to vector<8x1xf32>
    %48 = arith.divf %46, %47 : vector<8x1xf32>
    %49 = arith.mulf %42, %42 : vector<8x32xf32>
    %cst_22 = arith.constant dense<0.000000e+00> : vector<8xf32>
    %50 = vector.multi_reduction <add>, %49, %cst_22 [1] : vector<8x32xf32> to vector<8xf32>
    %51 = vector.shape_cast %50 : vector<8xf32> to vector<8x1xf32>
    %cst_23 = arith.constant 3.200000e+01 : f32
    %52 = vector.broadcast %cst_23 : f32 to vector<8x1xf32>
    %53 = arith.divf %51, %52 : vector<8x1xf32>
    %54 = arith.mulf %48, %48 : vector<8x1xf32>
    %55 = arith.subf %53, %54 : vector<8x1xf32>
    %56 = vector.broadcast %48 : vector<8x1xf32> to vector<8x32xf32>
    %57 = arith.subf %42, %56 : vector<8x32xf32>
    %cst_24 = arith.constant 9.99999974E-6 : f32
    %58 = vector.broadcast %cst_24 : f32 to vector<8x1xf32>
    %59 = arith.addf %55, %58 : vector<8x1xf32>
    %60 = math.rsqrt %59 : vector<8x1xf32>
    %61 = vector.broadcast %60 : vector<8x1xf32> to vector<8x32xf32>
    %62 = arith.mulf %57, %61 : vector<8x32xf32>
    %63 = vector.broadcast %43 : vector<1x32xf32> to vector<8x32xf32>
    %64 = arith.mulf %62, %63 : vector<8x32xf32>
    %65 = vector.broadcast %44 : vector<1x32xf32> to vector<8x32xf32>
    %66 = arith.addf %64, %65 : vector<8x32xf32>
    %c64 = arith.constant 64 : index
    %c0_25 = arith.constant 0 : index
    %67 = vector.load %arg2[%c64, %c0_25] : memref<608x128xbf16, #tpu.memory_space<vmem>>, vector<32x128xbf16>
    %68 = arith.truncf %66 : vector<8x32xf32> to vector<8x32xbf16>
    %cst_26 = arith.constant dense<0.000000e+00> : vector<8x128xf32>
    %69 = tpu.matmul %68, %67, %cst_26 {dimension_numbers = #tpu.dot_dimension_numbers<[1], [0], [0], [1], [0, 0, 1, 1], [], []>} : vector<8x32xbf16>, vector<32x128xbf16>, vector<8x128xf32> -> vector<8x128xf32>
    %c4 = arith.constant 4 : index
    %c0_27 = arith.constant 0 : index
    %70 = vector.load %arg3[%c4, %c0_27] : memref<88x128xf32, #tpu.memory_space<vmem>>, vector<1x128xf32>
    %71 = vector.broadcast %70 : vector<1x128xf32> to vector<8x128xf32>
    %72 = arith.addf %69, %71 : vector<8x128xf32>
    %cst_28 = arith.constant 0.000000e+00 : f32
    %73 = vector.broadcast %cst_28 : f32 to vector<8x128xf32>
    %74 = arith.maximumf %72, %73 : vector<8x128xf32>
    %c96 = arith.constant 96 : index
    %c0_29 = arith.constant 0 : index
    %75 = vector.load %arg2[%c96, %c0_29] : memref<608x128xbf16, #tpu.memory_space<vmem>>, vector<128x32xbf16>
    %76 = arith.truncf %74 : vector<8x128xf32> to vector<8x128xbf16>
    %cst_30 = arith.constant dense<0.000000e+00> : vector<8x32xf32>
    %77 = tpu.matmul %76, %75, %cst_30 {dimension_numbers = #tpu.dot_dimension_numbers<[1], [0], [0], [1], [0, 0, 1, 1], [], []>} : vector<8x128xbf16>, vector<128x32xbf16>, vector<8x32xf32> -> vector<8x32xf32>
    %c5 = arith.constant 5 : index
    %c0_31 = arith.constant 0 : index
    %78 = vector.load %arg3[%c5, %c0_31] : memref<88x128xf32, #tpu.memory_space<vmem>>, vector<1x32xf32>
    %79 = vector.broadcast %78 : vector<1x32xf32> to vector<8x32xf32>
    %80 = arith.addf %77, %79 : vector<8x32xf32>
    %81 = arith.addf %66, %80 : vector<8x32xf32>
    %c6 = arith.constant 6 : index
    %c0_32 = arith.constant 0 : index
    %82 = vector.load %arg3[%c6, %c0_32] : memref<88x128xf32, #tpu.memory_space<vmem>>, vector<1x32xf32>
    %c7 = arith.constant 7 : index
    %c0_33 = arith.constant 0 : index
    %83 = vector.load %arg3[%c7, %c0_33] : memref<88x128xf32, #tpu.memory_space<vmem>>, vector<1x32xf32>
    %cst_34 = arith.constant dense<0.000000e+00> : vector<8xf32>
    %84 = vector.multi_reduction <add>, %81, %cst_34 [1] : vector<8x32xf32> to vector<8xf32>
    %85 = vector.shape_cast %84 : vector<8xf32> to vector<8x1xf32>
    %cst_35 = arith.constant 3.200000e+01 : f32
    %86 = vector.broadcast %cst_35 : f32 to vector<8x1xf32>
    %87 = arith.divf %85, %86 : vector<8x1xf32>
    %88 = arith.mulf %81, %81 : vector<8x32xf32>
    %cst_36 = arith.constant dense<0.000000e+00> : vector<8xf32>
    %89 = vector.multi_reduction <add>, %88, %cst_36 [1] : vector<8x32xf32> to vector<8xf32>
    %90 = vector.shape_cast %89 : vector<8xf32> to vector<8x1xf32>
    %cst_37 = arith.constant 3.200000e+01 : f32
    %91 = vector.broadcast %cst_37 : f32 to vector<8x1xf32>
    %92 = arith.divf %90, %91 : vector<8x1xf32>
    %93 = arith.mulf %87, %87 : vector<8x1xf32>
    %94 = arith.subf %92, %93 : vector<8x1xf32>
    %95 = vector.broadcast %87 : vector<8x1xf32> to vector<8x32xf32>
    %96 = arith.subf %81, %95 : vector<8x32xf32>
    %cst_38 = arith.constant 9.99999974E-6 : f32
    %97 = vector.broadcast %cst_38 : f32 to vector<8x1xf32>
    %98 = arith.addf %94, %97 : vector<8x1xf32>
    %99 = math.rsqrt %98 : vector<8x1xf32>
    %100 = vector.broadcast %99 : vector<8x1xf32> to vector<8x32xf32>
    %101 = arith.mulf %96, %100 : vector<8x32xf32>
    %102 = vector.broadcast %82 : vector<1x32xf32> to vector<8x32xf32>
    %103 = arith.mulf %101, %102 : vector<8x32xf32>
    %104 = vector.broadcast %83 : vector<1x32xf32> to vector<8x32xf32>
    %105 = arith.addf %103, %104 : vector<8x32xf32>
    %c224 = arith.constant 224 : index
    %c0_39 = arith.constant 0 : index
    %106 = vector.load %arg2[%c224, %c0_39] : memref<608x128xbf16, #tpu.memory_space<vmem>>, vector<32x96xbf16>
    %107 = arith.truncf %105 : vector<8x32xf32> to vector<8x32xbf16>
    %cst_40 = arith.constant dense<0.000000e+00> : vector<8x96xf32>
    %108 = tpu.matmul %107, %106, %cst_40 {dimension_numbers = #tpu.dot_dimension_numbers<[1], [0], [0], [1], [0, 0, 1, 1], [], []>} : vector<8x32xbf16>, vector<32x96xbf16>, vector<8x96xf32> -> vector<8x96xf32>
    %c8 = arith.constant 8 : index
    %c0_41 = arith.constant 0 : index
    %109 = vector.load %arg3[%c8, %c0_41] : memref<88x128xf32, #tpu.memory_space<vmem>>, vector<1x96xf32>
    %110 = vector.broadcast %109 : vector<1x96xf32> to vector<8x96xf32>
    %111 = arith.addf %108, %110 : vector<8x96xf32>
    %112 = vector.extract_strided_slice %111 {offsets = [0, 0], sizes = [8, 32], strides = [1, 1]} : vector<8x96xf32> to vector<8x32xf32>
    %113 = vector.extract_strided_slice %111 {offsets = [0, 32], sizes = [8, 32], strides = [1, 1]} : vector<8x96xf32> to vector<8x32xf32>
    %114 = vector.extract_strided_slice %111 {offsets = [0, 64], sizes = [8, 32], strides = [1, 1]} : vector<8x96xf32> to vector<8x32xf32>
    %115 = arith.truncf %112 : vector<8x32xf32> to vector<8x32xbf16>
    %cst_42 = arith.constant dense<0.000000e+00> : vector<64x32xf32>
    %116 = tpu.matmul %3, %115, %cst_42 {dimension_numbers = #tpu.dot_dimension_numbers<[1], [0], [0], [1], [0, 0, 1, 1], [], []>} : vector<64x8xbf16>, vector<8x32xbf16>, vector<64x32xf32> -> vector<64x32xf32>
    %117 = arith.mulf %116, %2 : vector<64x32xf32>
    %118 = arith.truncf %117 : vector<64x32xf32> to vector<64x32xbf16>
    %119 = arith.truncf %113 : vector<8x32xf32> to vector<8x32xbf16>
    %cst_43 = arith.constant dense<0.000000e+00> : vector<64x8xf32>
    %120 = tpu.matmul %118, %119, %cst_43 {dimension_numbers = #tpu.dot_dimension_numbers<[1], [1], [0], [0], [0, 0, 1, 0], [], []>} : vector<64x32xbf16>, vector<8x32xbf16>, vector<64x8xf32> -> vector<64x8xf32>
    %cst_44 = arith.constant 5.000000e-01 : f32
    %121 = vector.broadcast %cst_44 : f32 to vector<64x8xf32>
    %122 = arith.mulf %120, %121 : vector<64x8xf32>
    %cst_45 = arith.constant dense<0xFF800000> : vector<64xf32>
    %123 = vector.multi_reduction <maximumf>, %122, %cst_45 [1] : vector<64x8xf32> to vector<64xf32>
    %124 = vector.shape_cast %123 : vector<64xf32> to vector<64x1xf32>
    %125 = vector.broadcast %124 : vector<64x1xf32> to vector<64x8xf32>
    %126 = arith.subf %122, %125 : vector<64x8xf32>
    %127 = math.exp %126 : vector<64x8xf32>
    %cst_46 = arith.constant dense<0.000000e+00> : vector<64xf32>
    %128 = vector.multi_reduction <add>, %127, %cst_46 [1] : vector<64x8xf32> to vector<64xf32>
    %129 = vector.shape_cast %128 : vector<64xf32> to vector<64x1xf32>
    %130 = vector.broadcast %129 : vector<64x1xf32> to vector<64x8xf32>
    %131 = arith.divf %127, %130 : vector<64x8xf32>
    %132 = arith.truncf %131 : vector<64x8xf32> to vector<64x8xbf16>
    %133 = arith.truncf %114 : vector<8x32xf32> to vector<8x32xbf16>
    %cst_47 = arith.constant dense<0.000000e+00> : vector<64x32xf32>
    %134 = tpu.matmul %132, %133, %cst_47 {dimension_numbers = #tpu.dot_dimension_numbers<[1], [0], [0], [1], [0, 0, 1, 1], [], []>} : vector<64x8xbf16>, vector<8x32xbf16>, vector<64x32xf32> -> vector<64x32xf32>
    %135 = arith.mulf %134, %2 : vector<64x32xf32>
    %136 = vector.shape_cast %135 : vector<64x32xf32> to vector<8x8x32xf32>
    %cst_48 = arith.constant dense<0.000000e+00> : vector<8x32xf32>
    %137 = vector.multi_reduction <add>, %136, %cst_48 [1] : vector<8x8x32xf32> to vector<8x32xf32>
    %c256 = arith.constant 256 : index
    %c0_49 = arith.constant 0 : index
    %138 = vector.load %arg2[%c256, %c0_49] : memref<608x128xbf16, #tpu.memory_space<vmem>>, vector<32x32xbf16>
    %139 = arith.truncf %137 : vector<8x32xf32> to vector<8x32xbf16>
    %cst_50 = arith.constant dense<0.000000e+00> : vector<8x32xf32>
    %140 = tpu.matmul %139, %138, %cst_50 {dimension_numbers = #tpu.dot_dimension_numbers<[1], [0], [0], [1], [0, 0, 1, 1], [], []>} : vector<8x32xbf16>, vector<32x32xbf16>, vector<8x32xf32> -> vector<8x32xf32>
    %c9 = arith.constant 9 : index
    %c0_51 = arith.constant 0 : index
    %141 = vector.load %arg3[%c9, %c0_51] : memref<88x128xf32, #tpu.memory_space<vmem>>, vector<1x32xf32>
    %142 = vector.broadcast %141 : vector<1x32xf32> to vector<8x32xf32>
    %143 = arith.addf %140, %142 : vector<8x32xf32>
    %144 = arith.addf %105, %143 : vector<8x32xf32>
    %c10 = arith.constant 10 : index
    %c0_52 = arith.constant 0 : index
    %145 = vector.load %arg3[%c10, %c0_52] : memref<88x128xf32, #tpu.memory_space<vmem>>, vector<1x32xf32>
    %c11 = arith.constant 11 : index
    %c0_53 = arith.constant 0 : index
    %146 = vector.load %arg3[%c11, %c0_53] : memref<88x128xf32, #tpu.memory_space<vmem>>, vector<1x32xf32>
    %cst_54 = arith.constant dense<0.000000e+00> : vector<8xf32>
    %147 = vector.multi_reduction <add>, %144, %cst_54 [1] : vector<8x32xf32> to vector<8xf32>
    %148 = vector.shape_cast %147 : vector<8xf32> to vector<8x1xf32>
    %cst_55 = arith.constant 3.200000e+01 : f32
    %149 = vector.broadcast %cst_55 : f32 to vector<8x1xf32>
    %150 = arith.divf %148, %149 : vector<8x1xf32>
    %151 = arith.mulf %144, %144 : vector<8x32xf32>
    %cst_56 = arith.constant dense<0.000000e+00> : vector<8xf32>
    %152 = vector.multi_reduction <add>, %151, %cst_56 [1] : vector<8x32xf32> to vector<8xf32>
    %153 = vector.shape_cast %152 : vector<8xf32> to vector<8x1xf32>
    %cst_57 = arith.constant 3.200000e+01 : f32
    %154 = vector.broadcast %cst_57 : f32 to vector<8x1xf32>
    %155 = arith.divf %153, %154 : vector<8x1xf32>
    %156 = arith.mulf %150, %150 : vector<8x1xf32>
    %157 = arith.subf %155, %156 : vector<8x1xf32>
    %158 = vector.broadcast %150 : vector<8x1xf32> to vector<8x32xf32>
    %159 = arith.subf %144, %158 : vector<8x32xf32>
    %cst_58 = arith.constant 9.99999974E-6 : f32
    %160 = vector.broadcast %cst_58 : f32 to vector<8x1xf32>
    %161 = arith.addf %157, %160 : vector<8x1xf32>
    %162 = math.rsqrt %161 : vector<8x1xf32>
    %163 = vector.broadcast %162 : vector<8x1xf32> to vector<8x32xf32>
    %164 = arith.mulf %159, %163 : vector<8x32xf32>
    %165 = vector.broadcast %145 : vector<1x32xf32> to vector<8x32xf32>
    %166 = arith.mulf %164, %165 : vector<8x32xf32>
    %167 = vector.broadcast %146 : vector<1x32xf32> to vector<8x32xf32>
    %168 = arith.addf %166, %167 : vector<8x32xf32>
    %c288 = arith.constant 288 : index
    %c0_59 = arith.constant 0 : index
    %169 = vector.load %arg2[%c288, %c0_59] : memref<608x128xbf16, #tpu.memory_space<vmem>>, vector<32x128xbf16>
    %170 = arith.truncf %168 : vector<8x32xf32> to vector<8x32xbf16>
    %cst_60 = arith.constant dense<0.000000e+00> : vector<8x128xf32>
    %171 = tpu.matmul %170, %169, %cst_60 {dimension_numbers = #tpu.dot_dimension_numbers<[1], [0], [0], [1], [0, 0, 1, 1], [], []>} : vector<8x32xbf16>, vector<32x128xbf16>, vector<8x128xf32> -> vector<8x128xf32>
    %c12 = arith.constant 12 : index
    %c0_61 = arith.constant 0 : index
    %172 = vector.load %arg3[%c12, %c0_61] : memref<88x128xf32, #tpu.memory_space<vmem>>, vector<1x128xf32>
    %173 = vector.broadcast %172 : vector<1x128xf32> to vector<8x128xf32>
    %174 = arith.addf %171, %173 : vector<8x128xf32>
    %cst_62 = arith.constant 0.000000e+00 : f32
    %175 = vector.broadcast %cst_62 : f32 to vector<8x128xf32>
    %176 = arith.maximumf %174, %175 : vector<8x128xf32>
    %c320 = arith.constant 320 : index
    %c0_63 = arith.constant 0 : index
    %177 = vector.load %arg2[%c320, %c0_63] : memref<608x128xbf16, #tpu.memory_space<vmem>>, vector<128x32xbf16>
    %178 = arith.truncf %176 : vector<8x128xf32> to vector<8x128xbf16>
    %cst_64 = arith.constant dense<0.000000e+00> : vector<8x32xf32>
    %179 = tpu.matmul %178, %177, %cst_64 {dimension_numbers = #tpu.dot_dimension_numbers<[1], [0], [0], [1], [0, 0, 1, 1], [], []>} : vector<8x128xbf16>, vector<128x32xbf16>, vector<8x32xf32> -> vector<8x32xf32>
    %c13 = arith.constant 13 : index
    %c0_65 = arith.constant 0 : index
    %180 = vector.load %arg3[%c13, %c0_65] : memref<88x128xf32, #tpu.memory_space<vmem>>, vector<1x32xf32>
    %181 = vector.broadcast %180 : vector<1x32xf32> to vector<8x32xf32>
    %182 = arith.addf %179, %181 : vector<8x32xf32>
    %183 = arith.addf %168, %182 : vector<8x32xf32>
    %c14 = arith.constant 14 : index
    %c0_66 = arith.constant 0 : index
    %184 = vector.load %arg3[%c14, %c0_66] : memref<88x128xf32, #tpu.memory_space<vmem>>, vector<1x32xf32>
    %c15 = arith.constant 15 : index
    %c0_67 = arith.constant 0 : index
    %185 = vector.load %arg3[%c15, %c0_67] : memref<88x128xf32, #tpu.memory_space<vmem>>, vector<1x32xf32>
    %cst_68 = arith.constant dense<0.000000e+00> : vector<8xf32>
    %186 = vector.multi_reduction <add>, %183, %cst_68 [1] : vector<8x32xf32> to vector<8xf32>
    %187 = vector.shape_cast %186 : vector<8xf32> to vector<8x1xf32>
    %cst_69 = arith.constant 3.200000e+01 : f32
    %188 = vector.broadcast %cst_69 : f32 to vector<8x1xf32>
    %189 = arith.divf %187, %188 : vector<8x1xf32>
    %190 = arith.mulf %183, %183 : vector<8x32xf32>
    %cst_70 = arith.constant dense<0.000000e+00> : vector<8xf32>
    %191 = vector.multi_reduction <add>, %190, %cst_70 [1] : vector<8x32xf32> to vector<8xf32>
    %192 = vector.shape_cast %191 : vector<8xf32> to vector<8x1xf32>
    %cst_71 = arith.constant 3.200000e+01 : f32
    %193 = vector.broadcast %cst_71 : f32 to vector<8x1xf32>
    %194 = arith.divf %192, %193 : vector<8x1xf32>
    %195 = arith.mulf %189, %189 : vector<8x1xf32>
    %196 = arith.subf %194, %195 : vector<8x1xf32>
    %197 = vector.broadcast %189 : vector<8x1xf32> to vector<8x32xf32>
    %198 = arith.subf %183, %197 : vector<8x32xf32>
    %cst_72 = arith.constant 9.99999974E-6 : f32
    %199 = vector.broadcast %cst_72 : f32 to vector<8x1xf32>
    %200 = arith.addf %196, %199 : vector<8x1xf32>
    %201 = math.rsqrt %200 : vector<8x1xf32>
    %202 = vector.broadcast %201 : vector<8x1xf32> to vector<8x32xf32>
    %203 = arith.mulf %198, %202 : vector<8x32xf32>
    %204 = vector.broadcast %184 : vector<1x32xf32> to vector<8x32xf32>
    %205 = arith.mulf %203, %204 : vector<8x32xf32>
    %206 = vector.broadcast %185 : vector<1x32xf32> to vector<8x32xf32>
    %207 = arith.addf %205, %206 : vector<8x32xf32>
    %cst_73 = arith.constant 2.000000e-01 : f32
    %208 = vector.broadcast %cst_73 : f32 to vector<8x32xf32>
    %209 = arith.mulf %1, %208 : vector<8x32xf32>
    %210 = arith.addf %207, %209 : vector<8x32xf32>
    %c448 = arith.constant 448 : index
    %c0_74 = arith.constant 0 : index
    %211 = vector.load %arg2[%c448, %c0_74] : memref<608x128xbf16, #tpu.memory_space<vmem>>, vector<32x64xbf16>
    %212 = arith.truncf %210 : vector<8x32xf32> to vector<8x32xbf16>
    %cst_75 = arith.constant dense<0.000000e+00> : vector<8x64xf32>
    %213 = tpu.matmul %212, %211, %cst_75 {dimension_numbers = #tpu.dot_dimension_numbers<[1], [0], [0], [1], [0, 0, 1, 1], [], []>} : vector<8x32xbf16>, vector<32x64xbf16>, vector<8x64xf32> -> vector<8x64xf32>
    %c16 = arith.constant 16 : index
    %c0_76 = arith.constant 0 : index
    %214 = vector.load %arg3[%c16, %c0_76] : memref<88x128xf32, #tpu.memory_space<vmem>>, vector<1x64xf32>
    %215 = vector.broadcast %214 : vector<1x64xf32> to vector<8x64xf32>
    %216 = arith.addf %213, %215 : vector<8x64xf32>
    %c18 = arith.constant 18 : index
    %c0_77 = arith.constant 0 : index
    %217 = vector.load %arg3[%c18, %c0_77] : memref<88x128xf32, #tpu.memory_space<vmem>>, vector<1x1xf32>
    %cst_78 = arith.constant 0.000000e+00 : f32
    %218 = vector.broadcast %cst_78 : f32 to vector<8x64xf32>
    %219 = arith.cmpf oge, %216, %218 : vector<8x64xf32>
    %220 = vector.broadcast %217 : vector<1x1xf32> to vector<8x64xf32>
    %221 = arith.mulf %220, %216 : vector<8x64xf32>
    %222 = arith.select %219, %216, %221 : vector<8x64xi1>, vector<8x64xf32>
    %c480 = arith.constant 480 : index
    %c0_79 = arith.constant 0 : index
    %223 = vector.load %arg2[%c480, %c0_79] : memref<608x128xbf16, #tpu.memory_space<vmem>>, vector<64x128xbf16>
    %224 = arith.truncf %222 : vector<8x64xf32> to vector<8x64xbf16>
    %cst_80 = arith.constant dense<0.000000e+00> : vector<8x128xf32>
    %225 = tpu.matmul %224, %223, %cst_80 {dimension_numbers = #tpu.dot_dimension_numbers<[1], [0], [0], [1], [0, 0, 1, 1], [], []>} : vector<8x64xbf16>, vector<64x128xbf16>, vector<8x128xf32> -> vector<8x128xf32>
    %c17 = arith.constant 17 : index
    %c0_81 = arith.constant 0 : index
    %226 = vector.load %arg3[%c17, %c0_81] : memref<88x128xf32, #tpu.memory_space<vmem>>, vector<1x128xf32>
    %227 = vector.broadcast %226 : vector<1x128xf32> to vector<8x128xf32>
    %228 = arith.addf %225, %227 : vector<8x128xf32>
    %c0_82 = arith.constant 0 : index
    %c0_83 = arith.constant 0 : index
    %c0_84 = arith.constant 0 : index
    %229 = vector.load %arg4[%c0_82, %c0_83, %c0_84] : memref<1x8x128xf32, #tpu.memory_space<vmem>>, vector<1x8x128xf32>
    %230 = vector.shape_cast %229 : vector<1x8x128xf32> to vector<8x128xf32>
    %231 = vector.shape_cast %228 : vector<8x128xf32> to vector<1x8x128xf32>
    tpu.vector_store %arg4[%c0_82, %c0_83, %c0_84], %231 {strides = array<i32>} : memref<1x8x128xf32, #tpu.memory_space<vmem>>, vector<1x8x128xf32>,
    return
  }
  func.func @transform_0(%arg0: i32) -> (i32, i32, i32) {
    %c0_i32 = arith.constant 0 : i32
    %c0_i32_0 = arith.constant 0 : i32
    %c0_i32_1 = arith.constant 0 : i32
    return %arg0, %c0_i32, %c0_i32_0 : i32, i32, i32
  }
  func.func @transform_1(%arg0: i32) -> (i32, i32) {
    %c0_i32 = arith.constant 0 : i32
    %c0_i32_0 = arith.constant 0 : i32
    %c0_i32_1 = arith.constant 0 : i32
    return %c0_i32, %c0_i32_0 : i32, i32
  }
  func.func @transform_2(%arg0: i32) -> (i32, i32) {
    %c0_i32 = arith.constant 0 : i32
    %c0_i32_0 = arith.constant 0 : i32
    %c0_i32_1 = arith.constant 0 : i32
    return %c0_i32, %c0_i32_0 : i32, i32
  }
  func.func @transform_3(%arg0: i32) -> (i32, i32, i32) {
    %c0_i32 = arith.constant 0 : i32
    %c0_i32_0 = arith.constant 0 : i32
    %c0_i32_1 = arith.constant 0 : i32
    return %arg0, %c0_i32, %c0_i32_0 : i32, i32, i32
  }
}

</mosaic_0001>

<llo_original>
// kernel: ms2_forward_pallas.1
$region0: #{ms2_forward_pallas.1}
  #allocation0 [shape = 'u32[]', space=smem, size = 0x4, offset = 0x4, fixed_abs, tag = 'smem constant byte address 0x4 - core index']
  #allocation1 [shape = 'u32[144,128]{1,0:T(1,128)}', space=vmem, size = 0x12000, scoped, tag = 'internal scratch']
  %s0 = inlined_call_operand.vmem [shape: f32[2,8,32], index: 0, kind: input, shape index: {}]
  %s1 = inlined_call_operand.vmem [shape: bf16[608,128], index: 1, kind: input, shape index: {}]
  %s2 = inlined_call_operand.vmem [shape: f32[88,128], index: 2, kind: input, shape index: {}]
  %s3 = inlined_call_operand.vmem [shape: f32[2,8,128], index: 3, kind: output, shape index: {}]
  %s4 = sld [smem:[#allocation0]]
  $region45: #{ms2_forward_pallas.1} parent=0
    _
  %s6 = ssub.s32 1, %s4
  %s7 = scalar_select 0, %s6, %s4
  loop: start=0, step=1, limit=4
  $region2: #{ms2_forward_pallas.1} parent=0 // loop_pre_header
    _
  $region3: #{ms2_forward_pallas.1} parent=0 // loop_header
    %s9 = sphi 0, %s13
    %p10 = scmp.ge.s32.totalorder %s9, 4
    %s19 = sphi 0, %s21
    %s22 = sphi 0, %s19
    %s23 = sphi 0, %s22
    %s39 = sphi 0, %s23
    %s43 = sphi 0, %s43
    %s45 = sphi 0, %s43
    %s46 = sphi 0, %s45
    %s60 = sphi 0, %s46
    %s64 = sphi 0, %s64
    %s66 = sphi 0, %s64
    %s67 = sphi 0, %s66
    %s81 = sphi 0, %s67
    %s87 = sphi 0, %s89
    %s90 = sphi 0, %s87
    %s91 = sphi 0, %s90
    %s107 = sphi 0, %s91
  $region4: #{ms2_forward_pallas.1} parent=0 // loop_header_branch
    %12 = sbr.rel (%p10) target = $region8
  $region5: #{ms2_forward_pallas.1} parent=0 // loop_body
    %s14 = ssub.s32 %s9, 1
    %s15 = ssub.s32 %s9, 2
    %s16 = sadd.s32 %s9, 1
    %s17 = ssub.s32 %s9, %s16
    %p18 = scmp.eq.s32.totalorder %s17, 0
    %s20 = sadd.s32 %s19, 1
    %s21 = scalar_select %p18, %s19, %s20
    %p24 = pneg %p18
    %p25 = scmp.eq.s32.totalorder %s9, 1
    %p26 = por %p24, %p25
    %p27 = scmp.ne.s32.totalorder %s19, %s22
    %p28 = scmp.eq.s32.totalorder %s9, 0
    %p29 = por %p27, %p28
    %p30 = scmp.ne.s32.totalorder %s19, %s22
    %p31 = scmp.eq.s32.totalorder %s14, 1
    %p32 = por %p30, %p31
    %p33 = scmp.ne.s32.totalorder %s22, %s23
    %p34 = scmp.eq.s32.totalorder %s14, 0
    %p35 = por %p33, %p34
    %p36 = scmp.ne.s32.totalorder %s22, %s23
    %p37 = scmp.eq.s32.totalorder %s15, 1
    %p38 = por %p36, %p37
    %p40 = scmp.ne.s32.totalorder %s23, %s39
    %p41 = scmp.eq.s32.totalorder %s15, 0
    %p42 = por %p40, %p41
    %s44 = sadd.s32 %s43, 1
    %p47 = scmp.eq.s32.totalorder %s9, 1
    %p48 = scmp.ne.s32.totalorder %s43, %s45
    %p49 = scmp.eq.s32.totalorder %s9, 0
    %p50 = por %p48, %p49
    %p51 = scmp.ne.s32.totalorder %s43, %s45
    %p52 = scmp.eq.s32.totalorder %s14, 1
    %p53 = por %p51, %p52
    %p54 = scmp.ne.s32.totalorder %s45, %s46
    %p55 = scmp.eq.s32.totalorder %s14, 0
    %p56 = por %p54, %p55
    %p57 = scmp.ne.s32.totalorder %s45, %s46
    %p58 = scmp.eq.s32.totalorder %s15, 1
    %p59 = por %p57, %p58
    %p61 = scmp.ne.s32.totalorder %s46, %s60
    %p62 = scmp.eq.s32.totalorder %s15, 0
    %p63 = por %p61, %p62
    %s65 = sadd.s32 %s64, 1
    %p68 = scmp.eq.s32.totalorder %s9, 1
    %p69 = scmp.ne.s32.totalorder %s64, %s66
    %p70 = scmp.eq.s32.totalorder %s9, 0
    %p71 = por %p69, %p70
    %p72 = scmp.ne.s32.totalorder %s64, %s66
    %p73 = scmp.eq.s32.totalorder %s14, 1
    %p74 = por %p72, %p73
    %p75 = scmp.ne.s32.totalorder %s66, %s67
    %p76 = scmp.eq.s32.totalorder %s14, 0
    %p77 = por %p75, %p76
    %p78 = scmp.ne.s32.totalorder %s66, %s67
    %p79 = scmp.eq.s32.totalorder %s15, 1
    %p80 = por %p78, %p79
    %p82 = scmp.ne.s32.totalorder %s67, %s81
    %p83 = scmp.eq.s32.totalorder %s15, 0
    %p84 = por %p82, %p83
    %s85 = ssub.s32 %s9, %s16
    %p86 = scmp.eq.s32.totalorder %s85, 0
    %s88 = sadd.s32 %s87, 1
    %s89 = scalar_select %p86, %s87, %s88
    %p92 = pneg %p86
    %p93 = scmp.eq.s32.totalorder %s9, 1
    %p94 = por %p92, %p93
    %p95 = scmp.ne.s32.totalorder %s87, %s90
    %p96 = scmp.eq.s32.totalorder %s9, 0
    %p97 = por %p95, %p96
    %p98 = scmp.ne.s32.totalorder %s87, %s90
    %p99 = scmp.eq.s32.totalorder %s14, 1
    %p100 = por %p98, %p99
    %p101 = scmp.ne.s32.totalorder %s90, %s91
    %p102 = scmp.eq.s32.totalorder %s14, 0
    %p103 = por %p101, %p102
    %p104 = scmp.ne.s32.totalorder %s90, %s91
    %p105 = scmp.eq.s32.totalorder %s15, 1
    %p106 = por %p104, %p105
    %p108 = scmp.ne.s32.totalorder %s91, %s107
    %p109 = scmp.eq.s32.totalorder %s15, 0
    %p110 = por %p108, %p109
    %p111 = scmp.le.s32.totalorder 1, %s9
    %p112 = scmp.lt.s32.totalorder %s9, 3
    %p113 = pnand %p111, %p112
    %p114 = pneg %p113
    // Predicated region
    $region9: #{ms2_forward_pallas.1} parent=5 // pred_check
      _
    $region10: #{ms2_forward_pallas.1} parent=5 // pred_check_branch
      %116 = sbr.rel (%p113) target = $region12
    $region11: #{ms2_forward_pallas.1} parent=5 // pred_region
      %s117 = ssub.s32 %s9, 1
      // Predicated region
      $region13: #{ms2_forward_pallas.1} parent=11 // pred_check
        %p118 = pneg %p56
      $region14: #{ms2_forward_pallas.1} parent=11 // pred_check_branch
        %120 = sbr.rel (%p118) target = $region16
      $region15: #{ms2_forward_pallas.1} parent=11 // pred_region
        _
      $region16: #{ms2_forward_pallas.1} parent=11 // pred_fallthru
        _
      // Predicated region
      $region17: #{ms2_forward_pallas.1} parent=11 // pred_check
        %p121 = pneg %p77
      $region18: #{ms2_forward_pallas.1} parent=11 // pred_check_branch
        %123 = sbr.rel (%p121) target = $region20
      $region19: #{ms2_forward_pallas.1} parent=11 // pred_region
        _
      $region20: #{ms2_forward_pallas.1} parent=11 // pred_fallthru
        _
    $region12: #{ms2_forward_pallas.1} parent=5 // pred_fallthru
      _
    %p124 = scmp.lt.s32.totalorder %s9, 2
    // Predicated region
    $region21: #{ms2_forward_pallas.1} parent=5 // pred_check
      %p125 = pneg %p124
    $region22: #{ms2_forward_pallas.1} parent=5 // pred_check_branch
      %127 = sbr.rel (%p125) target = $region24
    $region23: #{ms2_forward_pallas.1} parent=5 // pred_region
      // Predicated region
      $region25: #{ms2_forward_pallas.1} parent=23 // pred_check
        %p128 = pneg %p29
      $region26: #{ms2_forward_pallas.1} parent=23 // pred_check_branch
        %130 = sbr.rel (%p128) target = $region28
      $region27: #{ms2_forward_pallas.1} parent=23 // pred_region
        %p131 = scmp.lt.s32.totalorder %s9, 1
        %s132 = scalar_select %p131, %s9, 1
        %s133 = smul.addr %s132, 8
        %s134 = scalar_lea.vmem %s0, %s133
      $region28: #{ms2_forward_pallas.1} parent=23 // pred_fallthru
        _
    $region24: #{ms2_forward_pallas.1} parent=5 // pred_fallthru
      _
    %p135 = scmp.le.s32.totalorder 1, %s9
    %p136 = scmp.lt.s32.totalorder %s9, 3
    %p137 = pnand %p135, %p136
    %p138 = pneg %p137
    // Predicated region
    $region29: #{ms2_forward_pallas.1} parent=5 // pred_check
      _
    $region30: #{ms2_forward_pallas.1} parent=5 // pred_check_branch
      %140 = sbr.rel (%p137) target = $region32
    $region31: #{ms2_forward_pallas.1} parent=5 // pred_region
      %s141 = ssub.s32 %s9, 1
      %p142 = scmp.lt.s32.totalorder %s14, 1
      %s143 = scalar_select %p142, %s14, 1
      %s144 = smul.addr %s143, 8
      %s145 = scalar_lea.vmem %s0, %s144
      %p146 = pneg %p35
      %p147 = pneg %p32
      %p148 = pneg %p56
      %p149 = pneg %p53
      %p150 = pneg %p77
      %p151 = pneg %p74
      %p152 = pneg %p103
      %p153 = pneg %p100
      %p154 = scmp.lt.s32.totalorder %s14, 1
      %s155 = scalar_select %p154, %s14, 1
      %s156 = smul.addr %s155, 8
      %s157 = scalar_lea.vmem %s3, %s156
      %p158 = scmp.lt.s32.totalorder %s14, 1
      %s159 = scalar_select %p158, %s14, 1
      %s160 = smul.addr %s159, 8
      %s161 = scalar_lea.vmem %s0, %s160
      %p162 = scmp.lt.s32.totalorder %s14, 1
      %s163 = scalar_select %p162, %s14, 1
      %s164 = smul.addr %s163, 8
      %s165 = scalar_lea.vmem %s3, %s164
      %v167 = vld [vmem:[%s161] sm:$0xff]
      %v168 = vld [vmem:[%s2 + $0x18] sm:$0xff]
      %v169 = vld [vmem:[%s2 + $0x20] sm:$0xff]
      %v170 = vld [vmem:[%s2 + $0x28] sm:$0xff]
      %v171 = vld [vmem:[%s2 + $0x30] sm:$0xff]
      %v172 = vld [vmem:[%s2 + $0x38] sm:$0xff]
      %v173 = vld [vmem:[%s2 + $0x40] sm:$0xff]
      %v174 = vld [vmem:[%s2 + $0x48] sm:$0xff]
      %v175 = vld [vmem:[%s2 + $0x50] sm:$0xff]
      %v176 = vld [vmem:[%s1 + $0x110] sm:$0xf]
      %v177 = vld [vmem:[%s1 + $0x114] sm:$0xf]
      %v178 = vld [vmem:[%s1 + $0x118] sm:$0xf]
      %v179 = vld [vmem:[%s1 + $0x11c] sm:$0xf]
      %v180 = vld [vmem:[%s1 + $0x120] sm:$0xf]
      %v181 = vld [vmem:[%s1 + $0x124] sm:$0xf]
      %v182 = vld [vmem:[%s1 + $0x128] sm:$0xf]
      %v183 = vld [vmem:[%s1 + $0x12c] sm:$0xf]
      %v184 = vld [vmem:[%s1] sm:$0xf]
      %v185 = vld [vmem:[%s1 + $0x4] sm:$0xf]
      %v186 = vld [vmem:[%s1 + $0x8] sm:$0xf]
      %v187 = vld [vmem:[%s1 + $0xc] sm:$0xf]
      %v188 = vpack.c.bf16 %v167, %v167
      %v189 = vld [vmem:[%s2] sm:$0x1]
      %v190 = vlaneseq
      %v191 = vshrl.u32 %v190, 7
      %v192 = vsub.s32 0, %v191
      %v193 = vrot.slane %v189, %v192
      %v198 = vunpack.c.l.b16 %v184
      %v199 = vunpack.c.l.b16 %v185
      %v200 = vunpack.c.l.b16 %v186
      %v201 = vunpack.c.l.b16 %v187
      %v202 = vpack.c.b16 %v199, %v198
      %v203 = vpack.c.b16 %v201, %v200
      %vm206 = vcmask 261120
      %v208 = vsel %vm206, %v188, 0
      %210 = vmatprep.subr.bf16.mxu0 0
      %211 = vmatpush1.bf16.msra.mxu0 0
      %212 = vmatprep.subr.bf16.mxu0 0
      %213 = vmatpush1.bf16.msra.mxu0 0
      %214 = vmatprep.subr.bf16.mxu0 0
      %215 = vmatpush1.bf16.msra.mxu0 0
      %216 = vmatprep.subr.bf16.mxu0 0
      %217 = vmatpush1.bf16.msra.mxu0 0
      %218 = vmatprep.subr.bf16.mxu0 0
      %219 = vmatpush1.bf16.msra.mxu0 0
      %220 = vmatprep.subr.bf16.mxu0 0
      %221 = vmatpush1.bf16.msra.mxu0 0
      %222 = vmatprep.subr.bf16.mxu0 0
      %223 = vmatpush1.bf16.msra.mxu0 %v203
      %224 = vmatprep.subr.bf16.mxu0 0
      %225 = vmatpush1.bf16.msra.mxu0 %v202
      %226 = vmatprep.subr.bf16.mxu0 0
      %227 = vmatpush2.bf16.msra.mxu0 0
      %228 = vmatprep.subr.bf16.mxu0 0
      %229 = vmatpush2.bf16.msra.mxu0 0
      %230 = vmatprep.subr.bf16.mxu0 0
      %231 = vmatpush2.bf16.msra.mxu0 0
      %232 = vmatprep.subr.bf16.mxu0 0
      %233 = vmatpush2.bf16.msra.mxu0 0
      %234 = vmatprep.subr.bf16.mxu0 0
      %235 = vmatpush2.bf16.msra.mxu0 0
      %236 = vmatprep.subr.bf16.mxu0 0
      %237 = vmatpush2.bf16.msra.mxu0 0
      %238 = vmatprep.subr.bf16.mxu0 0
      %239 = vmatpush2.bf16.msra.mxu0 0
      %240 = vmatprep.subr.bf16.mxu0 0
      %241 = vmatpush2.bf16.msra.mxu0 0
      %242 = vmatprep.mubr.bf16.mxu0 0
      %243 = vmatmul.mubr.bf16.gmra.mxu0 %v208
      %v244 = vpop.f32.mrf.mxu0
      %v245 = vadd.f32 %v193, %v244
      %v246 = vpop.f32.mrf.mxu0
      %v247 = vpop.f32.mrf.mxu0
      %v248 = vpop.f32.mrf.mxu0
      %249 = vdwg.mxu0
      %v250 = vpack.c.bf16 %v245, %v245
      %v259 = vunpack.c.l.b16 %v176
      %v260 = vunpack.c.l.b16 %v177
      %v261 = vunpack.c.l.b16 %v178
      %v262 = vunpack.c.l.b16 %v179
      %v263 = vunpack.c.l.b16 %v180
      %v264 = vunpack.c.l.b16 %v181
      %v265 = vunpack.c.l.b16 %v182
      %v266 = vunpack.c.l.b16 %v183
      %v267 = vpack.c.b16 %v260, %v259
      %v268 = vpack.c.b16 %v262, %v261
      %v269 = vpack.c.b16 %v264, %v263
      %v270 = vpack.c.b16 %v266, %v265
      %vm271 = vcmask 64512
      %v273 = vsel %vm271, %v267, 0
      %v276 = vsel %vm271, %v268, 0
      %v279 = vsel %vm271, %v269, 0
      %v282 = vsel %vm271, %v270, 0
      %vm284 = vcmask 1043456
      %v286 = vsel %vm284, %v250, 0
      %288 = vmatprep.subr.bf16.mxu0 0
      %289 = vmatpush1.bf16.msra.mxu0 0
      %290 = vmatprep.subr.bf16.mxu0 0
      %291 = vmatpush1.bf16.msra.mxu0 0
      %292 = vmatprep.subr.bf16.mxu0 0
      %293 = vmatpush1.bf16.msra.mxu0 0
      %294 = vmatprep.subr.bf16.mxu0 0
      %295 = vmatpush1.bf16.msra.mxu0 0
      %296 = vmatprep.subr.bf16.mxu0 0
      %297 = vmatpush1.bf16.msra.mxu0 0
      %298 = vmatprep.subr.bf16.mxu0 0
      %299 = vmatpush1.bf16.msra.mxu0 0
      %300 = vmatprep.subr.bf16.mxu0 0
      %301 = vmatpush1.bf16.msra.mxu0 0
      %302 = vmatprep.subr.bf16.mxu0 0
      %303 = vmatpush1.bf16.msra.mxu0 %v286
      %304 = vmatprep.subr.bf16.mxu0 0
      %305 = vmatpush2.bf16.msra.mxu0 0
      %306 = vmatprep.subr.bf16.mxu0 0
      %307 = vmatpush2.bf16.msra.mxu0 0
      %308 = vmatprep.subr.bf16.mxu0 0
      %309 = vmatpush2.bf16.msra.mxu0 0
      %310 = vmatprep.subr.bf16.mxu0 0
      %311 = vmatpush2.bf16.msra.mxu0 0
      %312 = vmatprep.subr.bf16.mxu0 0
      %313 = vmatpush2.bf16.msra.mxu0 0
      %314 = vmatprep.subr.bf16.mxu0 0
      %315 = vmatpush2.bf16.msra.mxu0 0
      %316 = vmatprep.subr.bf16.mxu0 0
      %317 = vmatpush2.bf16.msra.mxu0 0
      %318 = vmatprep.subr.bf16.mxu0 0
      %319 = vmatpush2.bf16.msra.mxu0 0
      %320 = vmatprep.mubr.bf16.mxu0 0
      %321 = vmatmul.mubr.bf16.gmra.mxu0 %v273
      %v322 = vpop.f32.mrf.mxu0
      %v323 = vadd.f32 0.0, %v322
      %v324 = vpop.f32.mrf.mxu0
      %v325 = vpop.f32.mrf.mxu0
      %v326 = vadd.f32 0.0, %v325
      %v327 = vpop.f32.mrf.mxu0
      %328 = vmatprep.mubr.bf16.mxu0 0
      %329 = vmatmul.mubr.bf16.gmra.mxu0 %v276
      %v330 = vpop.f32.mrf.mxu0
      %v331 = vadd.f32 0.0, %v330
      %v332 = vpop.f32.mrf.mxu0
      %v333 = vpop.f32.mrf.mxu0
      %v334 = vadd.f32 0.0, %v333
      %v335 = vpop.f32.mrf.mxu0
      %336 = vmatprep.mubr.bf16.mxu0 0
      %337 = vmatmul.mubr.bf16.gmra.mxu0 %v279
      %v338 = vpop.f32.mrf.mxu0
      %v339 = vadd.f32 0.0, %v338
      %v340 = vpop.f32.mrf.mxu0
      %v341 = vpop.f32.mrf.mxu0
      %v342 = vadd.f32 0.0, %v341
      %v343 = vpop.f32.mrf.mxu0
      %344 = vmatprep.mubr.bf16.mxu0 0
      %345 = vmatmul.mubr.bf16.gmra.mxu0 %v282
      %v346 = vpop.f32.mrf.mxu0
      %v347 = vadd.f32 0.0, %v346
      %v348 = vpop.f32.mrf.mxu0
      %v349 = vpop.f32.mrf.mxu0
      %v350 = vadd.f32 0.0, %v349
      %v351 = vpop.f32.mrf.mxu0
      %352 = vdwg.mxu0
      %v353 = vmul.f32 %v323, %v168
      %v354 = vmul.f32 %v326, %v169
      %v355 = vmul.f32 %v331, %v170
      %v356 = vmul.f32 %v334, %v171
      %v357 = vmul.f32 %v339, %v172
      %v358 = vmul.f32 %v342, %v173
      %v359 = vmul.f32 %v347, %v174
      %v360 = vmul.f32 %v350, %v175
      %v361 = vpack.c.bf16 %v354, %v353
      %v362 = vpack.c.bf16 %v356, %v355
      %v363 = vpack.c.bf16 %v358, %v357
      %v364 = vpack.c.bf16 %v360, %v359
      %366 = vrot.lane.b32.xlu0 %v250, 96
      %v367 = vpop.permute.xlu0 %366
      %v369 = vsel %vm206, %v361, 0
      %v372 = vsel %vm206, %v362, 0
      %v375 = vsel %vm206, %v363, 0
      %v378 = vsel %vm206, %v364, 0
      %v381 = vsel %vm206, %v367, 0
      %383 = vmatprep.subr.bf16.mxu0 0
      %384 = vmatpush1.bf16.xpose.msra.mxu0 0
      %385 = vmatprep.subr.bf16.mxu0 0
      %386 = vmatpush1.bf16.xpose.msra.mxu0 0
      %387 = vmatprep.subr.bf16.mxu0 0
      %388 = vmatpush1.bf16.xpose.msra.mxu0 0
      %389 = vmatprep.subr.bf16.mxu0 0
      %390 = vmatpush1.bf16.xpose.msra.mxu0 0
      %391 = vmatprep.subr.bf16.mxu0 0
      %392 = vmatpush1.bf16.xpose.msra.mxu0 0
      %393 = vmatprep.subr.bf16.mxu0 0
      %394 = vmatpush1.bf16.xpose.msra.mxu0 0
      %395 = vmatprep.subr.bf16.mxu0 0
      %396 = vmatpush1.bf16.xpose.msra.mxu0 0
      %397 = vmatprep.subr.bf16.mxu0 0
      %398 = vmatpush1.bf16.xpose.msra.mxu0 %v381
      %399 = vmatprep.subr.bf16.mxu0 0
      %400 = vmatpush2.bf16.xpose.msra.mxu0 0
      %401 = vmatprep.subr.bf16.mxu0 0
      %402 = vmatpush2.bf16.xpose.msra.mxu0 0
      %403 = vmatprep.subr.bf16.mxu0 0
      %404 = vmatpush2.bf16.xpose.msra.mxu0 0
      %405 = vmatprep.subr.bf16.mxu0 0
      %406 = vmatpush2.bf16.xpose.msra.mxu0 0
      %407 = vmatprep.subr.bf16.mxu0 0
      %408 = vmatpush2.bf16.xpose.msra.mxu0 0
      %409 = vmatprep.subr.bf16.mxu0 0
      %410 = vmatpush2.bf16.xpose.msra.mxu0 0
      %411 = vmatprep.subr.bf16.mxu0 0
      %412 = vmatpush2.bf16.xpose.msra.mxu0 0
      %413 = vmatprep.subr.bf16.mxu0 0
      %414 = vmatpush2.bf16.xpose.msra.mxu0 0
      %415 = vmatprep.mubr.bf16.mxu0 0
      %416 = vmatmul.mubr.bf16.gmra.mxu0 %v369
      %v417 = vpop.f32.mrf.mxu0
      %v418 = vadd.f32 0.0, %v417
      %v419 = vpop.f32.mrf.mxu0
      %v420 = vpop.f32.mrf.mxu0
      %v421 = vadd.f32 0.0, %v420
      %v422 = vpop.f32.mrf.mxu0
      %423 = vmatprep.mubr.bf16.mxu0 0
      %424 = vmatmul.mubr.bf16.gmra.mxu0 %v372
      %v425 = vpop.f32.mrf.mxu0
      %v426 = vadd.f32 0.0, %v425
      %v427 = vpop.f32.mrf.mxu0
      %v428 = vpop.f32.mrf.mxu0
      %v429 = vadd.f32 0.0, %v428
      %v430 = vpop.f32.mrf.mxu0
      %431 = vmatprep.mubr.bf16.mxu0 0
      %432 = vmatmul.mubr.bf16.gmra.mxu0 %v375
      %v433 = vpop.f32.mrf.mxu0
      %v434 = vadd.f32 0.0, %v433
      %v435 = vpop.f32.mrf.mxu0
      %v436 = vpop.f32.mrf.mxu0
      %v437 = vadd.f32 0.0, %v436
      %v438 = vpop.f32.mrf.mxu0
      %439 = vmatprep.mubr.bf16.mxu0 0
      %440 = vmatmul.mubr.bf16.gmra.mxu0 %v378
      %v441 = vpop.f32.mrf.mxu0
      %v442 = vadd.f32 0.0, %v441
      %v443 = vpop.f32.mrf.mxu0
      %v444 = vpop.f32.mrf.mxu0
      %v445 = vadd.f32 0.0, %v444
      %v446 = vpop.f32.mrf.mxu0
      %447 = vdwg.mxu0
      %v448 = vmul.f32 %v418, 0.5
      %v449 = vmul.f32 %v421, 0.5
      %v450 = vmul.f32 %v426, 0.5
      %v451 = vmul.f32 %v429, 0.5
      %v452 = vmul.f32 %v434, 0.5
      %v453 = vmul.f32 %v437, 0.5
      %v454 = vmul.f32 %v442, 0.5
      %v455 = vmul.f32 %v445, 0.5
      %v456 = vsel %vm271, %v448, -inf
      %457 = vmax.xlane.f32.xlu0 %v456
      %v458 = vpop.xlane.xlu0 %457
      %v459 = vsel %vm271, %v449, -inf
      %460 = vmax.xlane.f32.xlu0 %v459
      %v461 = vpop.xlane.xlu0 %460
      %v462 = vsel %vm271, %v450, -inf
      %463 = vmax.xlane.f32.xlu0 %v462
      %v464 = vpop.xlane.xlu0 %463
      %v465 = vsel %vm271, %v451, -inf
      %466 = vmax.xlane.f32.xlu0 %v465
      %v467 = vpop.xlane.xlu0 %466
      %v468 = vsel %vm271, %v452, -inf
      %469 = vmax.xlane.f32.xlu0 %v468
      %v470 = vpop.xlane.xlu0 %469
      %v471 = vsel %vm271, %v453, -inf
      %472 = vmax.xlane.f32.xlu0 %v471
      %v473 = vpop.xlane.xlu0 %472
      %v474 = vsel %vm271, %v454, -inf
      %475 = vmax.xlane.f32.xlu0 %v474
      %v476 = vpop.xlane.xlu0 %475
      %v477 = vsel %vm271, %v455, -inf
      %478 = vmax.xlane.f32.xlu0 %v477
      %v479 = vpop.xlane.xlu0 %478
      %v480 = vsub.f32 %v448, %v458
      %v481 = vsub.f32 %v449, %v461
      %v482 = vsub.f32 %v450, %v464
      %v483 = vsub.f32 %v451, %v467
      %v484 = vsub.f32 %v452, %v470
      %v485 = vsub.f32 %v453, %v473
      %v486 = vsub.f32 %v454, %v476
      %v487 = vsub.f32 %v455, %v479
      %v488 = vmul.f32 %v480, 1.442695
      %v489 = vpow.pop %v488
      %v490 = vmul.f32 %v481, 1.442695
      %v491 = vpow.pop %v490
      %v492 = vmul.f32 %v482, 1.442695
      %v493 = vpow.pop %v492
      %v494 = vmul.f32 %v483, 1.442695
      %v495 = vpow.pop %v494
      %v496 = vmul.f32 %v484, 1.442695
      %v497 = vpow.pop %v496
      %v498 = vmul.f32 %v485, 1.442695
      %v499 = vpow.pop %v498
      %v500 = vmul.f32 %v486, 1.442695
      %v501 = vpow.pop %v500
      %v502 = vmul.f32 %v487, 1.442695
      %v503 = vpow.pop %v502
      %v504 = vsel %vm271, %v489, 0.0
      %505 = vadd.xlane.f32.xlu0 %v504
      %v506 = vpop.xlane.xlu0 %505
      %v507 = vsel %vm271, %v491, 0.0
      %508 = vadd.xlane.f32.xlu0 %v507
      %v509 = vpop.xlane.xlu0 %508
      %v510 = vsel %vm271, %v493, 0.0
      %511 = vadd.xlane.f32.xlu0 %v510
      %v512 = vpop.xlane.xlu0 %511
      %v513 = vsel %vm271, %v495, 0.0
      %514 = vadd.xlane.f32.xlu0 %v513
      %v515 = vpop.xlane.xlu0 %514
      %v516 = vsel %vm271, %v497, 0.0
      %517 = vadd.xlane.f32.xlu0 %v516
      %v518 = vpop.xlane.xlu0 %517
      %v519 = vsel %vm271, %v499, 0.0
      %520 = vadd.xlane.f32.xlu0 %v519
      %v521 = vpop.xlane.xlu0 %520
      %v522 = vsel %vm271, %v501, 0.0
      %523 = vadd.xlane.f32.xlu0 %v522
      %v524 = vpop.xlane.xlu0 %523
      %v525 = vsel %vm271, %v503, 0.0
      %526 = vadd.xlane.f32.xlu0 %v525
      %v527 = vpop.xlane.xlu0 %526
      %v528 = vrcp.pop %v506
      %v529 = vmul.f32 %v489, %v528
      %v530 = vrcp.pop %v509
      %v531 = vmul.f32 %v491, %v530
      %v532 = vrcp.pop %v512
      %v533 = vmul.f32 %v493, %v532
      %v534 = vrcp.pop %v515
      %v535 = vmul.f32 %v495, %v534
      %v536 = vrcp.pop %v518
      %v537 = vmul.f32 %v497, %v536
      %v538 = vrcp.pop %v521
      %v539 = vmul.f32 %v499, %v538
      %v540 = vrcp.pop %v524
      %v541 = vmul.f32 %v501, %v540
      %v542 = vrcp.pop %v527
      %v543 = vmul.f32 %v503, %v542
      %v544 = vpack.c.bf16 %v531, %v529
      %v545 = vpack.c.bf16 %v535, %v533
      %v546 = vpack.c.bf16 %v539, %v537
      %v547 = vpack.c.bf16 %v543, %v541
      %548 = vrot.lane.b32.xlu0 %v250, 64
      %v549 = vpop.permute.xlu0 %548
      %v551 = vsel %vm271, %v544, 0
      %v554 = vsel %vm271, %v545, 0
      %v557 = vsel %vm271, %v546, 0
      %v560 = vsel %vm271, %v547, 0
      %v563 = vsel %vm284, %v549, 0
      %565 = vmatprep.subr.bf16.mxu0 0
      %566 = vmatpush1.bf16.msra.mxu0 0
      %567 = vmatprep.subr.bf16.mxu0 0
      %568 = vmatpush1.bf16.msra.mxu0 0
      %569 = vmatprep.subr.bf16.mxu0 0
      %570 = vmatpush1.bf16.msra.mxu0 0
      %571 = vmatprep.subr.bf16.mxu0 0
      %572 = vmatpush1.bf16.msra.mxu0 0
      %573 = vmatprep.subr.bf16.mxu0 0
      %574 = vmatpush1.bf16.msra.mxu0 0
      %575 = vmatprep.subr.bf16.mxu0 0
      %576 = vmatpush1.bf16.msra.mxu0 0
      %577 = vmatprep.subr.bf16.mxu0 0
      %578 = vmatpush1.bf16.msra.mxu0 0
      %579 = vmatprep.subr.bf16.mxu0 0
      %580 = vmatpush1.bf16.msra.mxu0 %v563
      %581 = vmatprep.subr.bf16.mxu0 0
      %582 = vmatpush2.bf16.msra.mxu0 0
      %583 = vmatprep.subr.bf16.mxu0 0
      %584 = vmatpush2.bf16.msra.mxu0 0
      %585 = vmatprep.subr.bf16.mxu0 0
      %586 = vmatpush2.bf16.msra.mxu0 0
      %587 = vmatprep.subr.bf16.mxu0 0
      %588 = vmatpush2.bf16.msra.mxu0 0
      %589 = vmatprep.subr.bf16.mxu0 0
      %590 = vmatpush2.bf16.msra.mxu0 0
      %591 = vmatprep.subr.bf16.mxu0 0
      %592 = vmatpush2.bf16.msra.mxu0 0
      %593 = vmatprep.subr.bf16.mxu0 0
      %594 = vmatpush2.bf16.msra.mxu0 0
      %595 = vmatprep.subr.bf16.mxu0 0
      %596 = vmatpush2.bf16.msra.mxu0 0
      %597 = vmatprep.mubr.bf16.mxu0 0
      %598 = vmatmul.mubr.bf16.gmra.mxu0 %v551
      %v599 = vpop.f32.mrf.mxu0
      %v600 = vadd.f32 0.0, %v599
      %v601 = vpop.f32.mrf.mxu0
      %v602 = vpop.f32.mrf.mxu0
      %v603 = vadd.f32 0.0, %v602
      %v604 = vpop.f32.mrf.mxu0
      %605 = vmatprep.mubr.bf16.mxu0 0
      %606 = vmatmul.mubr.bf16.gmra.mxu0 %v554
      %v607 = vpop.f32.mrf.mxu0
      %v608 = vadd.f32 0.0, %v607
      %v609 = vpop.f32.mrf.mxu0
      %v610 = vpop.f32.mrf.mxu0
      %v611 = vadd.f32 0.0, %v610
      %v612 = vpop.f32.mrf.mxu0
      %613 = vmatprep.mubr.bf16.mxu0 0
      %614 = vmatmul.mubr.bf16.gmra.mxu0 %v557
      %v615 = vpop.f32.mrf.mxu0
      %v616 = vadd.f32 0.0, %v615
      %v617 = vpop.f32.mrf.mxu0
      %v618 = vpop.f32.mrf.mxu0
      %v619 = vadd.f32 0.0, %v618
      %v620 = vpop.f32.mrf.mxu0
      %621 = vmatprep.mubr.bf16.mxu0 0
      %622 = vmatmul.mubr.bf16.gmra.mxu0 %v560
      %v623 = vpop.f32.mrf.mxu0
      %v624 = vadd.f32 0.0, %v623
      %v625 = vpop.f32.mrf.mxu0
      %v626 = vpop.f32.mrf.mxu0
      %v627 = vadd.f32 0.0, %v626
      %v628 = vpop.f32.mrf.mxu0
      %629 = vdwg.mxu0
      %v630 = vmul.f32 %v600, %v168
      %v631 = vmul.f32 %v603, %v169
      %v632 = vmul.f32 %v608, %v170
      %v633 = vmul.f32 %v611, %v171
      %v634 = vmul.f32 %v616, %v172
      %v635 = vmul.f32 %v619, %v173
      %v636 = vmul.f32 %v624, %v174
      %v637 = vmul.f32 %v627, %v175
      %v638 = vsel %vm206, %v630, 0.0
      %v639 = vrot.slane %v638, 4
      %v640 = vadd.f32 %v638, %v639
      %v641 = vrot.slane %v640, 2
      %v642 = vadd.f32 %v640, %v641
      %v643 = vrot.slane %v642, 1
      %v644 = vadd.f32 %v642, %v643
      %v645 = vsel %vm206, %v631, 0.0
      %v646 = vrot.slane %v645, 4
      %v647 = vadd.f32 %v645, %v646
      %v648 = vrot.slane %v647, 2
      %v649 = vadd.f32 %v647, %v648
      %v650 = vrot.slane %v649, 1
      %v651 = vadd.f32 %v649, %v650
      %v652 = vsel %vm206, %v632, 0.0
      %v653 = vrot.slane %v652, 4
      %v654 = vadd.f32 %v652, %v653
      %v655 = vrot.slane %v654, 2
      %v656 = vadd.f32 %v654, %v655
      %v657 = vrot.slane %v656, 1
      %v658 = vadd.f32 %v656, %v657
      %v659 = vsel %vm206, %v633, 0.0
      %v660 = vrot.slane %v659, 4
      %v661 = vadd.f32 %v659, %v660
      %v662 = vrot.slane %v661, 2
      %v663 = vadd.f32 %v661, %v662
      %v664 = vrot.slane %v663, 1
      %v665 = vadd.f32 %v663, %v664
      %v666 = vsel %vm206, %v634, 0.0
      %v667 = vrot.slane %v666, 4
      %v668 = vadd.f32 %v666, %v667
      %v669 = vrot.slane %v668, 2
      %v670 = vadd.f32 %v668, %v669
      %v671 = vrot.slane %v670, 1
      %v672 = vadd.f32 %v670, %v671
      %v673 = vsel %vm206, %v635, 0.0
      %v674 = vrot.slane %v673, 4
      %v675 = vadd.f32 %v673, %v674
      %v676 = vrot.slane %v675, 2
      %v677 = vadd.f32 %v675, %v676
      %v678 = vrot.slane %v677, 1
      %v679 = vadd.f32 %v677, %v678
      %v680 = vsel %vm206, %v636, 0.0
      %v681 = vrot.slane %v680, 4
      %v682 = vadd.f32 %v680, %v681
      %v683 = vrot.slane %v682, 2
      %v684 = vadd.f32 %v682, %v683
      %v685 = vrot.slane %v684, 1
      %v686 = vadd.f32 %v684, %v685
      %v687 = vsel %vm206, %v637, 0.0
      %v688 = vrot.slane %v687, 4
      %v689 = vadd.f32 %v687, %v688
      %v690 = vrot.slane %v689, 2
      %v691 = vadd.f32 %v689, %v690
      %v692 = vrot.slane %v691, 1
      %v693 = vadd.f32 %v691, %v692
      %v694 = vld [vmem:[%s1 + $0x10] sm:$0xf]
      %v695 = vld [vmem:[%s1 + $0x14] sm:$0xf]
      %v696 = vld [vmem:[%s1 + $0x18] sm:$0xf]
      %v697 = vld [vmem:[%s1 + $0x1c] sm:$0xf]
      %v698 = vpack.c.bf16 %v644, %v644
      %v699 = vpack.c.bf16 %v651, %v651
      %v700 = vpack.c.bf16 %v658, %v658
      %v701 = vpack.c.bf16 %v665, %v665
      %v702 = vpack.c.bf16 %v672, %v672
      %v703 = vpack.c.bf16 %v679, %v679
      %v704 = vpack.c.bf16 %v686, %v686
      %v705 = vpack.c.bf16 %v693, %v693
      %v706 = vld [vmem:[%s2 + $0x1] sm:$0x1]
      %v707 = vlaneseq
      %v708 = vshrl.u32 %v707, 7
      %v709 = vsub.s32 0, %v708
      %v710 = vrot.slane %v706, %v709
      %v719 = vunpack.c.l.b16 %v698
      %v720 = vunpack.c.l.b16 %v699
      %v721 = vunpack.c.l.b16 %v700
      %v722 = vunpack.c.l.b16 %v701
      %v723 = vunpack.c.l.b16 %v702
      %v724 = vunpack.c.l.b16 %v703
      %v725 = vunpack.c.l.b16 %v704
      %v726 = vunpack.c.l.b16 %v705
      %vm727 = vcmask 1041409
      %v728 = vsel %vm727, %v720, %v719
      %vm729 = vcmask 1042434
      %v730 = vsel %vm729, %v721, %v728
      %vm731 = vcmask 1043459
      %v732 = vsel %vm731, %v722, %v730
      %vm733 = vcmask 1044484
      %v734 = vsel %vm733, %v723, %v732
      %vm735 = vcmask 1045509
      %v736 = vsel %vm735, %v724, %v734
      %vm737 = vcmask 1046534
      %v738 = vsel %vm737, %v725, %v736
      %vm739 = vcmask 1047559
      %v740 = vsel %vm739, %v726, %v738
      %v741 = vpack.c.b16 %v740, %v740
      %v746 = vunpack.c.l.b16 %v694
      %v747 = vunpack.c.l.b16 %v695
      %v748 = vunpack.c.l.b16 %v696
      %v749 = vunpack.c.l.b16 %v697
      %v750 = vpack.c.b16 %v747, %v746
      %v751 = vpack.c.b16 %v749, %v748
      %v755 = vsel %vm206, %v741, 0
      %757 = vmatprep.subr.bf16.mxu0 0
      %758 = vmatpush1.bf16.msra.mxu0 0
      %759 = vmatprep.subr.bf16.mxu0 0
      %760 = vmatpush1.bf16.msra.mxu0 0
      %761 = vmatprep.subr.bf16.mxu0 0
      %762 = vmatpush1.bf16.msra.mxu0 0
      %763 = vmatprep.subr.bf16.mxu0 0
      %764 = vmatpush1.bf16.msra.mxu0 0
      %765 = vmatprep.subr.bf16.mxu0 0
      %766 = vmatpush1.bf16.msra.mxu0 0
      %767 = vmatprep.subr.bf16.mxu0 0
      %768 = vmatpush1.bf16.msra.mxu0 0
      %769 = vmatprep.subr.bf16.mxu0 0
      %770 = vmatpush1.bf16.msra.mxu0 %v751
      %771 = vmatprep.subr.bf16.mxu0 0
      %772 = vmatpush1.bf16.msra.mxu0 %v750
      %773 = vmatprep.subr.bf16.mxu0 0
      %774 = vmatpush2.bf16.msra.mxu0 0
      %775 = vmatprep.subr.bf16.mxu0 0
      %776 = vmatpush2.bf16.msra.mxu0 0
      %777 = vmatprep.subr.bf16.mxu0 0
      %778 = vmatpush2.bf16.msra.mxu0 0
      %779 = vmatprep.subr.bf16.mxu0 0
      %780 = vmatpush2.bf16.msra.mxu0 0
      %781 = vmatprep.subr.bf16.mxu0 0
      %782 = vmatpush2.bf16.msra.mxu0 0
      %783 = vmatprep.subr.bf16.mxu0 0
      %784 = vmatpush2.bf16.msra.mxu0 0
      %785 = vmatprep.subr.bf16.mxu0 0
      %786 = vmatpush2.bf16.msra.mxu0 0
      %787 = vmatprep.subr.bf16.mxu0 0
      %788 = vmatpush2.bf16.msra.mxu0 0
      %789 = vmatprep.mubr.bf16.mxu0 0
      %790 = vmatmul.mubr.bf16.gmra.mxu0 %v755
      %v791 = vpop.f32.mrf.mxu0
      %v792 = vadd.f32 %v710, %v791
      %v793 = vpop.f32.mrf.mxu0
      %v794 = vpop.f32.mrf.mxu0
      %v795 = vpop.f32.mrf.mxu0
      %796 = vdwg.mxu0
      %v797 = vadd.f32 %v167, %v792
      %v798 = vld [vmem:[%s2 + $0x2] sm:$0x1]
      %v799 = vld [vmem:[%s2 + $0x3] sm:$0x1]
      %v800 = vsel %vm206, %v797, 0.0
      %801 = vadd.xlane.f32.xlu0 %v800
      %v802 = vpop.xlane.xlu0 %801
      %v803 = vrcp.pop 32.0
      %v804 = vmul.f32 %v802, %v803
      %v805 = vmul.f32 %v797, %v797
      %v806 = vsel %vm206, %v805, 0.0
      %807 = vadd.xlane.f32.xlu0 %v806
      %v808 = vpop.xlane.xlu0 %807
      %v809 = vmul.f32 %v808, %v803
      %v810 = vmul.f32 %v804, %v804
      %v811 = vsub.f32 %v809, %v810
      %v812 = vsub.f32 %v797, %v804
      %v813 = vadd.f32 %v811, 1e-05
      %v814 = vrsqrt.pop %v813
      %v815 = vmul.f32 %v812, %v814
      %v816 = vlaneseq
      %v817 = vshrl.u32 %v816, 7
      %v818 = vsub.s32 0, %v817
      %v819 = vrot.slane %v798, %v818
      %v820 = vmul.f32 %v815, %v819
      %v821 = vlaneseq
      %v822 = vshrl.u32 %v821, 7
      %v823 = vsub.s32 0, %v822
      %v824 = vrot.slane %v799, %v823
      %v825 = vadd.f32 %v820, %v824
      %v826 = vld [vmem:[%s1 + $0x20] sm:$0xf]
      %v827 = vld [vmem:[%s1 + $0x24] sm:$0xf]
      %v828 = vld [vmem:[%s1 + $0x28] sm:$0xf]
      %v829 = vld [vmem:[%s1 + $0x2c] sm:$0xf]
      %v830 = vpack.c.bf16 %v825, %v825
      %v831 = vld [vmem:[%s2 + $0x4] sm:$0x1]
      %v832 = vlaneseq
      %v833 = vshrl.u32 %v832, 7
      %v834 = vsub.s32 0, %v833
      %v835 = vrot.slane %v831, %v834
      %v840 = vunpack.c.l.b16 %v826
      %v841 = vunpack.c.l.b16 %v827
      %v842 = vunpack.c.l.b16 %v828
      %v843 = vunpack.c.l.b16 %v829
      %v844 = vpack.c.b16 %v841, %v840
      %v845 = vpack.c.b16 %v843, %v842
      %v849 = vsel %vm206, %v830, 0
      %851 = vmatprep.subr.bf16.mxu0 0
      %852 = vmatpush1.bf16.msra.mxu0 0
      %853 = vmatprep.subr.bf16.mxu0 0
      %854 = vmatpush1.bf16.msra.mxu0 0
      %855 = vmatprep.subr.bf16.mxu0 0
      %856 = vmatpush1.bf16.msra.mxu0 0
      %857 = vmatprep.subr.bf16.mxu0 0
      %858 = vmatpush1.bf16.msra.mxu0 0
      %859 = vmatprep.subr.bf16.mxu0 0
      %860 = vmatpush1.bf16.msra.mxu0 0
      %861 = vmatprep.subr.bf16.mxu0 0
      %862 = vmatpush1.bf16.msra.mxu0 0
      %863 = vmatprep.subr.bf16.mxu0 0
      %864 = vmatpush1.bf16.msra.mxu0 %v845
      %865 = vmatprep.subr.bf16.mxu0 0
      %866 = vmatpush1.bf16.msra.mxu0 %v844
      %867 = vmatprep.subr.bf16.mxu0 0
      %868 = vmatpush2.bf16.msra.mxu0 0
      %869 = vmatprep.subr.bf16.mxu0 0
      %870 = vmatpush2.bf16.msra.mxu0 0
      %871 = vmatprep.subr.bf16.mxu0 0
      %872 = vmatpush2.bf16.msra.mxu0 0
      %873 = vmatprep.subr.bf16.mxu0 0
      %874 = vmatpush2.bf16.msra.mxu0 0
      %875 = vmatprep.subr.bf16.mxu0 0
      %876 = vmatpush2.bf16.msra.mxu0 0
      %877 = vmatprep.subr.bf16.mxu0 0
      %878 = vmatpush2.bf16.msra.mxu0 0
      %879 = vmatprep.subr.bf16.mxu0 0
      %880 = vmatpush2.bf16.msra.mxu0 0
      %881 = vmatprep.subr.bf16.mxu0 0
      %882 = vmatpush2.bf16.msra.mxu0 0
      %883 = vmatprep.mubr.bf16.mxu0 0
      %884 = vmatmul.mubr.bf16.gmra.mxu0 %v849
      %v885 = vpop.f32.mrf.mxu0
      %v886 = vadd.f32 %v835, %v885
      %v887 = vpop.f32.mrf.mxu0
      %v888 = vpop.f32.mrf.mxu0
      %v889 = vpop.f32.mrf.mxu0
      %890 = vdwg.mxu0
      %v891 = vmax.f32 %v886, 0.0
      %v892 = vld [vmem:[%s1 + $0x30] sm:$0xf]
      %v893 = vld [vmem:[%s1 + $0x34] sm:$0xf]
      %v894 = vld [vmem:[%s1 + $0x38] sm:$0xf]
      %v895 = vld [vmem:[%s1 + $0x3c] sm:$0xf]
      %v896 = vld [vmem:[%s1 + $0x40] sm:$0xf]
      %v897 = vld [vmem:[%s1 + $0x44] sm:$0xf]
      %v898 = vld [vmem:[%s1 + $0x48] sm:$0xf]
      %v899 = vld [vmem:[%s1 + $0x4c] sm:$0xf]
      %v900 = vld [vmem:[%s1 + $0x50] sm:$0xf]
      %v901 = vld [vmem:[%s1 + $0x54] sm:$0xf]
      %v902 = vld [vmem:[%s1 + $0x58] sm:$0xf]
      %v903 = vld [vmem:[%s1 + $0x5c] sm:$0xf]
      %v904 = vld [vmem:[%s1 + $0x60] sm:$0xf]
      %v905 = vld [vmem:[%s1 + $0x64] sm:$0xf]
      %v906 = vld [vmem:[%s1 + $0x68] sm:$0xf]
      %v907 = vld [vmem:[%s1 + $0x6c] sm:$0xf]
      %v908 = vpack.c.bf16 %v891, %v891
      %v909 = vld [vmem:[%s2 + $0x5] sm:$0x1]
      %v910 = vlaneseq
      %v911 = vshrl.u32 %v910, 7
      %v912 = vsub.s32 0, %v911
      %v913 = vrot.slane %v909, %v912
      %v930 = vunpack.c.l.b16 %v892
      %v931 = vunpack.c.l.b16 %v893
      %v932 = vunpack.c.l.b16 %v894
      %v933 = vunpack.c.l.b16 %v895
      %v934 = vunpack.c.l.b16 %v896
      %v935 = vunpack.c.l.b16 %v897
      %v936 = vunpack.c.l.b16 %v898
      %v937 = vunpack.c.l.b16 %v899
      %v938 = vunpack.c.l.b16 %v900
      %v939 = vunpack.c.l.b16 %v901
      %v940 = vunpack.c.l.b16 %v902
      %v941 = vunpack.c.l.b16 %v903
      %v942 = vunpack.c.l.b16 %v904
      %v943 = vunpack.c.l.b16 %v905
      %v944 = vunpack.c.l.b16 %v906
      %v945 = vunpack.c.l.b16 %v907
      %v946 = vpack.c.b16 %v931, %v930
      %v947 = vpack.c.b16 %v933, %v932
      %v948 = vpack.c.b16 %v935, %v934
      %v949 = vpack.c.b16 %v937, %v936
      %v950 = vpack.c.b16 %v939, %v938
      %v951 = vpack.c.b16 %v941, %v940
      %v952 = vpack.c.b16 %v943, %v942
      %v953 = vpack.c.b16 %v945, %v944
      %962 = vmatprep.subr.bf16.mxu0 0
      %963 = vmatpush1.bf16.msra.mxu0 %v953
      %964 = vmatprep.subr.bf16.mxu0 0
      %965 = vmatpush1.bf16.msra.mxu0 %v952
      %966 = vmatprep.subr.bf16.mxu0 0
      %967 = vmatpush1.bf16.msra.mxu0 %v951
      %968 = vmatprep.subr.bf16.mxu0 0
      %969 = vmatpush1.bf16.msra.mxu0 %v950
      %970 = vmatprep.subr.bf16.mxu0 0
      %971 = vmatpush1.bf16.msra.mxu0 %v949
      %972 = vmatprep.subr.bf16.mxu0 0
      %973 = vmatpush1.bf16.msra.mxu0 %v948
      %974 = vmatprep.subr.bf16.mxu0 0
      %975 = vmatpush1.bf16.msra.mxu0 %v947
      %976 = vmatprep.subr.bf16.mxu0 0
      %977 = vmatpush1.bf16.msra.mxu0 %v946
      %978 = vmatprep.subr.bf16.mxu0 0
      %979 = vmatpush2.bf16.msra.mxu0 0
      %980 = vmatprep.subr.bf16.mxu0 0
      %981 = vmatpush2.bf16.msra.mxu0 0
      %982 = vmatprep.subr.bf16.mxu0 0
      %983 = vmatpush2.bf16.msra.mxu0 0
      %984 = vmatprep.subr.bf16.mxu0 0
      %985 = vmatpush2.bf16.msra.mxu0 0
      %986 = vmatprep.subr.bf16.mxu0 0
      %987 = vmatpush2.bf16.msra.mxu0 0
      %988 = vmatprep.subr.bf16.mxu0 0
      %989 = vmatpush2.bf16.msra.mxu0 0
      %990 = vmatprep.subr.bf16.mxu0 0
      %991 = vmatpush2.bf16.msra.mxu0 0
      %992 = vmatprep.subr.bf16.mxu0 0
      %993 = vmatpush2.bf16.msra.mxu0 0
      %994 = vmatprep.mubr.bf16.mxu0 0
      %995 = vmatmul.mubr.bf16.gmra.mxu0 %v908
      %v996 = vpop.f32.mrf.mxu0
      %v997 = vadd.f32 %v913, %v996
      %v998 = vpop.f32.mrf.mxu0
      %v999 = vpop.f32.mrf.mxu0
      %v1000 = vpop.f32.mrf.mxu0
      %1001 = vdwg.mxu0
      %v1002 = vadd.f32 %v825, %v997
      %v1003 = vld [vmem:[%s2 + $0x6] sm:$0x1]
      %v1004 = vld [vmem:[%s2 + $0x7] sm:$0x1]
      %v1005 = vsel %vm206, %v1002, 0.0
      %1006 = vadd.xlane.f32.xlu0 %v1005
      %v1007 = vpop.xlane.xlu0 %1006
      %v1008 = vmul.f32 %v1007, %v803
      %v1009 = vmul.f32 %v1002, %v1002
      %v1010 = vsel %vm206, %v1009, 0.0
      %1011 = vadd.xlane.f32.xlu0 %v1010
      %v1012 = vpop.xlane.xlu0 %1011
      %v1013 = vmul.f32 %v1012, %v803
      %v1014 = vmul.f32 %v1008, %v1008
      %v1015 = vsub.f32 %v1013, %v1014
      %v1016 = vsub.f32 %v1002, %v1008
      %v1017 = vadd.f32 %v1015, 1e-05
      %v1018 = vrsqrt.pop %v1017
      %v1019 = vmul.f32 %v1016, %v1018
      %v1020 = vlaneseq
      %v1021 = vshrl.u32 %v1020, 7
      %v1022 = vsub.s32 0, %v1021
      %v1023 = vrot.slane %v1003, %v1022
      %v1024 = vmul.f32 %v1019, %v1023
      %v1025 = vlaneseq
      %v1026 = vshrl.u32 %v1025, 7
      %v1027 = vsub.s32 0, %v1026
      %v1028 = vrot.slane %v1004, %v1027
      %v1029 = vadd.f32 %v1024, %v1028
      %v1030 = vld [vmem:[%s1 + $0x70] sm:$0xf]
      %v1031 = vld [vmem:[%s1 + $0x74] sm:$0xf]
      %v1032 = vld [vmem:[%s1 + $0x78] sm:$0xf]
      %v1033 = vld [vmem:[%s1 + $0x7c] sm:$0xf]
      %v1034 = vpack.c.bf16 %v1029, %v1029
      %v1035 = vld [vmem:[%s2 + $0x8] sm:$0x1]
      %v1036 = vlaneseq
      %v1037 = vshrl.u32 %v1036, 7
      %v1038 = vsub.s32 0, %v1037
      %v1039 = vrot.slane %v1035, %v1038
      %v1044 = vunpack.c.l.b16 %v1030
      %v1045 = vunpack.c.l.b16 %v1031
      %v1046 = vunpack.c.l.b16 %v1032
      %v1047 = vunpack.c.l.b16 %v1033
      %v1048 = vpack.c.b16 %v1045, %v1044
      %v1049 = vpack.c.b16 %v1047, %v1046
      %v1053 = vsel %vm206, %v1034, 0
      %1055 = vmatprep.subr.bf16.mxu0 0
      %1056 = vmatpush1.bf16.msra.mxu0 0
      %1057 = vmatprep.subr.bf16.mxu0 0
      %1058 = vmatpush1.bf16.msra.mxu0 0
      %1059 = vmatprep.subr.bf16.mxu0 0
      %1060 = vmatpush1.bf16.msra.mxu0 0
      %1061 = vmatprep.subr.bf16.mxu0 0
      %1062 = vmatpush1.bf16.msra.mxu0 0
      %1063 = vmatprep.subr.bf16.mxu0 0
      %1064 = vmatpush1.bf16.msra.mxu0 0
      %1065 = vmatprep.subr.bf16.mxu0 0
      %1066 = vmatpush1.bf16.msra.mxu0 0
      %1067 = vmatprep.subr.bf16.mxu0 0
      %1068 = vmatpush1.bf16.msra.mxu0 %v1049
      %1069 = vmatprep.subr.bf16.mxu0 0
      %1070 = vmatpush1.bf16.msra.mxu0 %v1048
      %1071 = vmatprep.subr.bf16.mxu0 0
      %1072 = vmatpush2.bf16.msra.mxu0 0
      %1073 = vmatprep.subr.bf16.mxu0 0
      %1074 = vmatpush2.bf16.msra.mxu0 0
      %1075 = vmatprep.subr.bf16.mxu0 0
      %1076 = vmatpush2.bf16.msra.mxu0 0
      %1077 = vmatprep.subr.bf16.mxu0 0
      %1078 = vmatpush2.bf16.msra.mxu0 0
      %1079 = vmatprep.subr.bf16.mxu0 0
      %1080 = vmatpush2.bf16.msra.mxu0 0
      %1081 = vmatprep.subr.bf16.mxu0 0
      %1082 = vmatpush2.bf16.msra.mxu0 0
      %1083 = vmatprep.subr.bf16.mxu0 0
      %1084 = vmatpush2.bf16.msra.mxu0 0
      %1085 = vmatprep.subr.bf16.mxu0 0
      %1086 = vmatpush2.bf16.msra.mxu0 0
      %1087 = vmatprep.mubr.bf16.mxu0 0
      %1088 = vmatmul.mubr.bf16.gmra.mxu0 %v1053
      %v1089 = vpop.f32.mrf.mxu0
      %v1090 = vadd.f32 %v1039, %v1089
      %v1091 = vpop.f32.mrf.mxu0
      %v1092 = vpop.f32.mrf.mxu0
      %v1093 = vpop.f32.mrf.mxu0
      %1094 = vdwg.mxu0
      %v1095 = vpack.c.bf16 %v1090, %v1090
      %v1097 = vsel %vm284, %v1095, 0
      %1099 = vmatprep.subr.bf16.mxu0 0
      %1100 = vmatpush1.bf16.msra.mxu0 0
      %1101 = vmatprep.subr.bf16.mxu0 0
      %1102 = vmatpush1.bf16.msra.mxu0 0
      %1103 = vmatprep.subr.bf16.mxu0 0
      %1104 = vmatpush1.bf16.msra.mxu0 0
      %1105 = vmatprep.subr.bf16.mxu0 0
      %1106 = vmatpush1.bf16.msra.mxu0 0
      %1107 = vmatprep.subr.bf16.mxu0 0
      %1108 = vmatpush1.bf16.msra.mxu0 0
      %1109 = vmatprep.subr.bf16.mxu0 0
      %1110 = vmatpush1.bf16.msra.mxu0 0
      %1111 = vmatprep.subr.bf16.mxu0 0
      %1112 = vmatpush1.bf16.msra.mxu0 0
      %1113 = vmatprep.subr.bf16.mxu0 0
      %1114 = vmatpush1.bf16.msra.mxu0 %v1097
      %1115 = vmatprep.subr.bf16.mxu0 0
      %1116 = vmatpush2.bf16.msra.mxu0 0
      %1117 = vmatprep.subr.bf16.mxu0 0
      %1118 = vmatpush2.bf16.msra.mxu0 0
      %1119 = vmatprep.subr.bf16.mxu0 0
      %1120 = vmatpush2.bf16.msra.mxu0 0
      %1121 = vmatprep.subr.bf16.mxu0 0
      %1122 = vmatpush2.bf16.msra.mxu0 0
      %1123 = vmatprep.subr.bf16.mxu0 0
      %1124 = vmatpush2.bf16.msra.mxu0 0
      %1125 = vmatprep.subr.bf16.mxu0 0
      %1126 = vmatpush2.bf16.msra.mxu0 0
      %1127 = vmatprep.subr.bf16.mxu0 0
      %1128 = vmatpush2.bf16.msra.mxu0 0
      %1129 = vmatprep.subr.bf16.mxu0 0
      %1130 = vmatpush2.bf16.msra.mxu0 0
      %1131 = vmatprep.mubr.bf16.mxu0 0
      %1132 = vmatmul.mubr.bf16.gmra.mxu0 %v273
      %v1133 = vpop.f32.mrf.mxu0
      %v1134 = vadd.f32 0.0, %v1133
      %v1135 = vpop.f32.mrf.mxu0
      %v1136 = vpop.f32.mrf.mxu0
      %v1137 = vadd.f32 0.0, %v1136
      %v1138 = vpop.f32.mrf.mxu0
      %1139 = vmatprep.mubr.bf16.mxu0 0
      %1140 = vmatmul.mubr.bf16.gmra.mxu0 %v276
      %v1141 = vpop.f32.mrf.mxu0
      %v1142 = vadd.f32 0.0, %v1141
      %v1143 = vpop.f32.mrf.mxu0
      %v1144 = vpop.f32.mrf.mxu0
      %v1145 = vadd.f32 0.0, %v1144
      %v1146 = vpop.f32.mrf.mxu0
      %1147 = vmatprep.mubr.bf16.mxu0 0
      %1148 = vmatmul.mubr.bf16.gmra.mxu0 %v279
      %v1149 = vpop.f32.mrf.mxu0
      %v1150 = vadd.f32 0.0, %v1149
      %v1151 = vpop.f32.mrf.mxu0
      %v1152 = vpop.f32.mrf.mxu0
      %v1153 = vadd.f32 0.0, %v1152
      %v1154 = vpop.f32.mrf.mxu0
      %1155 = vmatprep.mubr.bf16.mxu0 0
      %1156 = vmatmul.mubr.bf16.gmra.mxu0 %v282
      %v1157 = vpop.f32.mrf.mxu0
      %v1158 = vadd.f32 0.0, %v1157
      %v1159 = vpop.f32.mrf.mxu0
      %v1160 = vpop.f32.mrf.mxu0
      %v1161 = vadd.f32 0.0, %v1160
      %v1162 = vpop.f32.mrf.mxu0
      %1163 = vdwg.mxu0
      %v1164 = vmul.f32 %v1134, %v168
      %v1165 = vmul.f32 %v1137, %v169
      %v1166 = vmul.f32 %v1142, %v170
      %v1167 = vmul.f32 %v1145, %v171
      %v1168 = vmul.f32 %v1150, %v172
      %v1169 = vmul.f32 %v1153, %v173
      %v1170 = vmul.f32 %v1158, %v174
      %v1171 = vmul.f32 %v1161, %v175
      %v1172 = vpack.c.bf16 %v1165, %v1164
      %v1173 = vpack.c.bf16 %v1167, %v1166
      %v1174 = vpack.c.bf16 %v1169, %v1168
      %v1175 = vpack.c.bf16 %v1171, %v1170
      %1177 = vrot.lane.b32.xlu0 %v1095, 96
      %v1178 = vpop.permute.xlu0 %1177
      %v1180 = vsel %vm206, %v1172, 0
      %v1183 = vsel %vm206, %v1173, 0
      %v1186 = vsel %vm206, %v1174, 0
      %v1189 = vsel %vm206, %v1175, 0
      %v1192 = vsel %vm206, %v1178, 0
      %1194 = vmatprep.subr.bf16.mxu0 0
      %1195 = vmatpush1.bf16.xpose.msra.mxu0 0
      %1196 = vmatprep.subr.bf16.mxu0 0
      %1197 = vmatpush1.bf16.xpose.msra.mxu0 0
      %1198 = vmatprep.subr.bf16.mxu0 0
      %1199 = vmatpush1.bf16.xpose.msra.mxu0 0
      %1200 = vmatprep.subr.bf16.mxu0 0
      %1201 = vmatpush1.bf16.xpose.msra.mxu0 0
      %1202 = vmatprep.subr.bf16.mxu0 0
      %1203 = vmatpush1.bf16.xpose.msra.mxu0 0
      %1204 = vmatprep.subr.bf16.mxu0 0
      %1205 = vmatpush1.bf16.xpose.msra.mxu0 0
      %1206 = vmatprep.subr.bf16.mxu0 0
      %1207 = vmatpush1.bf16.xpose.msra.mxu0 0
      %1208 = vmatprep.subr.bf16.mxu0 0
      %1209 = vmatpush1.bf16.xpose.msra.mxu0 %v1192
      %1210 = vmatprep.subr.bf16.mxu0 0
      %1211 = vmatpush2.bf16.xpose.msra.mxu0 0
      %1212 = vmatprep.subr.bf16.mxu0 0
      %1213 = vmatpush2.bf16.xpose.msra.mxu0 0
      %1214 = vmatprep.subr.bf16.mxu0 0
      %1215 = vmatpush2.bf16.xpose.msra.mxu0 0
      %1216 = vmatprep.subr.bf16.mxu0 0
      %1217 = vmatpush2.bf16.xpose.msra.mxu0 0
      %1218 = vmatprep.subr.bf16.mxu0 0
      %1219 = vmatpush2.bf16.xpose.msra.mxu0 0
      %1220 = vmatprep.subr.bf16.mxu0 0
      %1221 = vmatpush2.bf16.xpose.msra.mxu0 0
      %1222 = vmatprep.subr.bf16.mxu0 0
      %1223 = vmatpush2.bf16.xpose.msra.mxu0 0
      %1224 = vmatprep.subr.bf16.mxu0 0
      %1225 = vmatpush2.bf16.xpose.msra.mxu0 0
      %1226 = vmatprep.mubr.bf16.mxu0 0
      %1227 = vmatmul.mubr.bf16.gmra.mxu0 %v1180
      %v1228 = vpop.f32.mrf.mxu0
      %v1229 = vadd.f32 0.0, %v1228
      %v1230 = vpop.f32.mrf.mxu0
      %v1231 = vpop.f32.mrf.mxu0
      %v1232 = vadd.f32 0.0, %v1231
      %v1233 = vpop.f32.mrf.mxu0
      %1234 = vmatprep.mubr.bf16.mxu0 0
      %1235 = vmatmul.mubr.bf16.gmra.mxu0 %v1183
      %v1236 = vpop.f32.mrf.mxu0
      %v1237 = vadd.f32 0.0, %v1236
      %v1238 = vpop.f32.mrf.mxu0
      %v1239 = vpop.f32.mrf.mxu0
      %v1240 = vadd.f32 0.0, %v1239
      %v1241 = vpop.f32.mrf.mxu0
      %1242 = vmatprep.mubr.bf16.mxu0 0
      %1243 = vmatmul.mubr.bf16.gmra.mxu0 %v1186
      %v1244 = vpop.f32.mrf.mxu0
      %v1245 = vadd.f32 0.0, %v1244
      %v1246 = vpop.f32.mrf.mxu0
      %v1247 = vpop.f32.mrf.mxu0
      %v1248 = vadd.f32 0.0, %v1247
      %v1249 = vpop.f32.mrf.mxu0
      %1250 = vmatprep.mubr.bf16.mxu0 0
      %1251 = vmatmul.mubr.bf16.gmra.mxu0 %v1189
      %v1252 = vpop.f32.mrf.mxu0
      %v1253 = vadd.f32 0.0, %v1252
      %v1254 = vpop.f32.mrf.mxu0
      %v1255 = vpop.f32.mrf.mxu0
      %v1256 = vadd.f32 0.0, %v1255
      %v1257 = vpop.f32.mrf.mxu0
      %1258 = vdwg.mxu0
      %v1259 = vmul.f32 %v1229, 0.5
      %v1260 = vmul.f32 %v1232, 0.5
      %v1261 = vmul.f32 %v1237, 0.5
      %v1262 = vmul.f32 %v1240, 0.5
      %v1263 = vmul.f32 %v1245, 0.5
      %v1264 = vmul.f32 %v1248, 0.5
      %v1265 = vmul.f32 %v1253, 0.5
      %v1266 = vmul.f32 %v1256, 0.5
      %v1267 = vsel %vm271, %v1259, -inf
      %1268 = vmax.xlane.f32.xlu0 %v1267
      %v1269 = vpop.xlane.xlu0 %1268
      %v1270 = vsel %vm271, %v1260, -inf
      %1271 = vmax.xlane.f32.xlu0 %v1270
      %v1272 = vpop.xlane.xlu0 %1271
      %v1273 = vsel %vm271, %v1261, -inf
      %1274 = vmax.xlane.f32.xlu0 %v1273
      %v1275 = vpop.xlane.xlu0 %1274
      %v1276 = vsel %vm271, %v1262, -inf
      %1277 = vmax.xlane.f32.xlu0 %v1276
      %v1278 = vpop.xlane.xlu0 %1277
      %v1279 = vsel %vm271, %v1263, -inf
      %1280 = vmax.xlane.f32.xlu0 %v1279
      %v1281 = vpop.xlane.xlu0 %1280
      %v1282 = vsel %vm271, %v1264, -inf
      %1283 = vmax.xlane.f32.xlu0 %v1282
      %v1284 = vpop.xlane.xlu0 %1283
      %v1285 = vsel %vm271, %v1265, -inf
      %1286 = vmax.xlane.f32.xlu0 %v1285
      %v1287 = vpop.xlane.xlu0 %1286
      %v1288 = vsel %vm271, %v1266, -inf
      %1289 = vmax.xlane.f32.xlu0 %v1288
      %v1290 = vpop.xlane.xlu0 %1289
      %v1291 = vsub.f32 %v1259, %v1269
      %v1292 = vsub.f32 %v1260, %v1272
      %v1293 = vsub.f32 %v1261, %v1275
      %v1294 = vsub.f32 %v1262, %v1278
      %v1295 = vsub.f32 %v1263, %v1281
      %v1296 = vsub.f32 %v1264, %v1284
      %v1297 = vsub.f32 %v1265, %v1287
      %v1298 = vsub.f32 %v1266, %v1290
      %v1299 = vmul.f32 %v1291, 1.442695
      %v1300 = vpow.pop %v1299
      %v1301 = vmul.f32 %v1292, 1.442695
      %v1302 = vpow.pop %v1301
      %v1303 = vmul.f32 %v1293, 1.442695
      %v1304 = vpow.pop %v1303
      %v1305 = vmul.f32 %v1294, 1.442695
      %v1306 = vpow.pop %v1305
      %v1307 = vmul.f32 %v1295, 1.442695
      %v1308 = vpow.pop %v1307
      %v1309 = vmul.f32 %v1296, 1.442695
      %v1310 = vpow.pop %v1309
      %v1311 = vmul.f32 %v1297, 1.442695
      %v1312 = vpow.pop %v1311
      %v1313 = vmul.f32 %v1298, 1.442695
      %v1314 = vpow.pop %v1313
      %v1315 = vsel %vm271, %v1300, 0.0
      %1316 = vadd.xlane.f32.xlu0 %v1315
      %v1317 = vpop.xlane.xlu0 %1316
      %v1318 = vsel %vm271, %v1302, 0.0
      %1319 = vadd.xlane.f32.xlu0 %v1318
      %v1320 = vpop.xlane.xlu0 %1319
      %v1321 = vsel %vm271, %v1304, 0.0
      %1322 = vadd.xlane.f32.xlu0 %v1321
      %v1323 = vpop.xlane.xlu0 %1322
      %v1324 = vsel %vm271, %v1306, 0.0
      %1325 = vadd.xlane.f32.xlu0 %v1324
      %v1326 = vpop.xlane.xlu0 %1325
      %v1327 = vsel %vm271, %v1308, 0.0
      %1328 = vadd.xlane.f32.xlu0 %v1327
      %v1329 = vpop.xlane.xlu0 %1328
      %v1330 = vsel %vm271, %v1310, 0.0
      %1331 = vadd.xlane.f32.xlu0 %v1330
      %v1332 = vpop.xlane.xlu0 %1331
      %v1333 = vsel %vm271, %v1312, 0.0
      %1334 = vadd.xlane.f32.xlu0 %v1333
      %v1335 = vpop.xlane.xlu0 %1334
      %v1336 = vsel %vm271, %v1314, 0.0
      %1337 = vadd.xlane.f32.xlu0 %v1336
      %v1338 = vpop.xlane.xlu0 %1337
      %v1339 = vrcp.pop %v1317
      %v1340 = vmul.f32 %v1300, %v1339
      %v1341 = vrcp.pop %v1320
      %v1342 = vmul.f32 %v1302, %v1341
      %v1343 = vrcp.pop %v1323
      %v1344 = vmul.f32 %v1304, %v1343
      %v1345 = vrcp.pop %v1326
      %v1346 = vmul.f32 %v1306, %v1345
      %v1347 = vrcp.pop %v1329
      %v1348 = vmul.f32 %v1308, %v1347
      %v1349 = vrcp.pop %v1332
      %v1350 = vmul.f32 %v1310, %v1349
      %v1351 = vrcp.pop %v1335
      %v1352 = vmul.f32 %v1312, %v1351
      %v1353 = vrcp.pop %v1338
      %v1354 = vmul.f32 %v1314, %v1353
      %v1355 = vpack.c.bf16 %v1342, %v1340
      %v1356 = vpack.c.bf16 %v1346, %v1344
      %v1357 = vpack.c.bf16 %v1350, %v1348
      %v1358 = vpack.c.bf16 %v1354, %v1352
      %1359 = vrot.lane.b32.xlu0 %v1095, 64
      %v1360 = vpop.permute.xlu0 %1359
      %v1362 = vsel %vm271, %v1355, 0
      %v1365 = vsel %vm271, %v1356, 0
      %v1368 = vsel %vm271, %v1357, 0
      %v1371 = vsel %vm271, %v1358, 0
      %v1374 = vsel %vm284, %v1360, 0
      %1376 = vmatprep.subr.bf16.mxu0 0
      %1377 = vmatpush1.bf16.msra.mxu0 0
      %1378 = vmatprep.subr.bf16.mxu0 0
      %1379 = vmatpush1.bf16.msra.mxu0 0
      %1380 = vmatprep.subr.bf16.mxu0 0
      %1381 = vmatpush1.bf16.msra.mxu0 0
      %1382 = vmatprep.subr.bf16.mxu0 0
      %1383 = vmatpush1.bf16.msra.mxu0 0
      %1384 = vmatprep.subr.bf16.mxu0 0
      %1385 = vmatpush1.bf16.msra.mxu0 0
      %1386 = vmatprep.subr.bf16.mxu0 0
      %1387 = vmatpush1.bf16.msra.mxu0 0
      %1388 = vmatprep.subr.bf16.mxu0 0
      %1389 = vmatpush1.bf16.msra.mxu0 0
      %1390 = vmatprep.subr.bf16.mxu0 0
      %1391 = vmatpush1.bf16.msra.mxu0 %v1374
      %1392 = vmatprep.subr.bf16.mxu0 0
      %1393 = vmatpush2.bf16.msra.mxu0 0
      %1394 = vmatprep.subr.bf16.mxu0 0
      %1395 = vmatpush2.bf16.msra.mxu0 0
      %1396 = vmatprep.subr.bf16.mxu0 0
      %1397 = vmatpush2.bf16.msra.mxu0 0
      %1398 = vmatprep.subr.bf16.mxu0 0
      %1399 = vmatpush2.bf16.msra.mxu0 0
      %1400 = vmatprep.subr.bf16.mxu0 0
      %1401 = vmatpush2.bf16.msra.mxu0 0
      %1402 = vmatprep.subr.bf16.mxu0 0
      %1403 = vmatpush2.bf16.msra.mxu0 0
      %1404 = vmatprep.subr.bf16.mxu0 0
      %1405 = vmatpush2.bf16.msra.mxu0 0
      %1406 = vmatprep.subr.bf16.mxu0 0
      %1407 = vmatpush2.bf16.msra.mxu0 0
      %1408 = vmatprep.mubr.bf16.mxu0 0
      %1409 = vmatmul.mubr.bf16.gmra.mxu0 %v1362
      %v1410 = vpop.f32.mrf.mxu0
      %v1411 = vadd.f32 0.0, %v1410
      %v1412 = vpop.f32.mrf.mxu0
      %v1413 = vpop.f32.mrf.mxu0
      %v1414 = vadd.f32 0.0, %v1413
      %v1415 = vpop.f32.mrf.mxu0
      %1416 = vmatprep.mubr.bf16.mxu0 0
      %1417 = vmatmul.mubr.bf16.gmra.mxu0 %v1365
      %v1418 = vpop.f32.mrf.mxu0
      %v1419 = vadd.f32 0.0, %v1418
      %v1420 = vpop.f32.mrf.mxu0
      %v1421 = vpop.f32.mrf.mxu0
      %v1422 = vadd.f32 0.0, %v1421
      %v1423 = vpop.f32.mrf.mxu0
      %1424 = vmatprep.mubr.bf16.mxu0 0
      %1425 = vmatmul.mubr.bf16.gmra.mxu0 %v1368
      %v1426 = vpop.f32.mrf.mxu0
      %v1427 = vadd.f32 0.0, %v1426
      %v1428 = vpop.f32.mrf.mxu0
      %v1429 = vpop.f32.mrf.mxu0
      %v1430 = vadd.f32 0.0, %v1429
      %v1431 = vpop.f32.mrf.mxu0
      %1432 = vmatprep.mubr.bf16.mxu0 0
      %1433 = vmatmul.mubr.bf16.gmra.mxu0 %v1371
      %v1434 = vpop.f32.mrf.mxu0
      %v1435 = vadd.f32 0.0, %v1434
      %v1436 = vpop.f32.mrf.mxu0
      %v1437 = vpop.f32.mrf.mxu0
      %v1438 = vadd.f32 0.0, %v1437
      %v1439 = vpop.f32.mrf.mxu0
      %1440 = vdwg.mxu0
      %v1441 = vmul.f32 %v1411, %v168
      %v1442 = vmul.f32 %v1414, %v169
      %v1443 = vmul.f32 %v1419, %v170
      %v1444 = vmul.f32 %v1422, %v171
      %v1445 = vmul.f32 %v1427, %v172
      %v1446 = vmul.f32 %v1430, %v173
      %v1447 = vmul.f32 %v1435, %v174
      %v1448 = vmul.f32 %v1438, %v175
      %v1449 = vsel %vm206, %v1441, 0.0
      %v1450 = vrot.slane %v1449, 4
      %v1451 = vadd.f32 %v1449, %v1450
      %v1452 = vrot.slane %v1451, 2
      %v1453 = vadd.f32 %v1451, %v1452
      %v1454 = vrot.slane %v1453, 1
      %v1455 = vadd.f32 %v1453, %v1454
      %v1456 = vsel %vm206, %v1442, 0.0
      %v1457 = vrot.slane %v1456, 4
      %v1458 = vadd.f32 %v1456, %v1457
      %v1459 = vrot.slane %v1458, 2
      %v1460 = vadd.f32 %v1458, %v1459
      %v1461 = vrot.slane %v1460, 1
      %v1462 = vadd.f32 %v1460, %v1461
      %v1463 = vsel %vm206, %v1443, 0.0
      %v1464 = vrot.slane %v1463, 4
      %v1465 = vadd.f32 %v1463, %v1464
      %v1466 = vrot.slane %v1465, 2
      %v1467 = vadd.f32 %v1465, %v1466
      %v1468 = vrot.slane %v1467, 1
      %v1469 = vadd.f32 %v1467, %v1468
      %v1470 = vsel %vm206, %v1444, 0.0
      %v1471 = vrot.slane %v1470, 4
      %v1472 = vadd.f32 %v1470, %v1471
      %v1473 = vrot.slane %v1472, 2
      %v1474 = vadd.f32 %v1472, %v1473
      %v1475 = vrot.slane %v1474, 1
      %v1476 = vadd.f32 %v1474, %v1475
      %v1477 = vsel %vm206, %v1445, 0.0
      %v1478 = vrot.slane %v1477, 4
      %v1479 = vadd.f32 %v1477, %v1478
      %v1480 = vrot.slane %v1479, 2
      %v1481 = vadd.f32 %v1479, %v1480
      %v1482 = vrot.slane %v1481, 1
      %v1483 = vadd.f32 %v1481, %v1482
      %v1484 = vsel %vm206, %v1446, 0.0
      %v1485 = vrot.slane %v1484, 4
      %v1486 = vadd.f32 %v1484, %v1485
      %v1487 = vrot.slane %v1486, 2
      %v1488 = vadd.f32 %v1486, %v1487
      %v1489 = vrot.slane %v1488, 1
      %v1490 = vadd.f32 %v1488, %v1489
      %v1491 = vsel %vm206, %v1447, 0.0
      %v1492 = vrot.slane %v1491, 4
      %v1493 = vadd.f32 %v1491, %v1492
      %v1494 = vrot.slane %v1493, 2
      %v1495 = vadd.f32 %v1493, %v1494
      %v1496 = vrot.slane %v1495, 1
      %v1497 = vadd.f32 %v1495, %v1496
      %v1498 = vsel %vm206, %v1448, 0.0
      %v1499 = vrot.slane %v1498, 4
      %v1500 = vadd.f32 %v1498, %v1499
      %v1501 = vrot.slane %v1500, 2
      %v1502 = vadd.f32 %v1500, %v1501
      %v1503 = vrot.slane %v1502, 1
      %v1504 = vadd.f32 %v1502, %v1503
      %v1505 = vld [vmem:[%s1 + $0x80] sm:$0xf]
      %v1506 = vld [vmem:[%s1 + $0x84] sm:$0xf]
      %v1507 = vld [vmem:[%s1 + $0x88] sm:$0xf]
      %v1508 = vld [vmem:[%s1 + $0x8c] sm:$0xf]
      %v1509 = vpack.c.bf16 %v1455, %v1455
      %v1510 = vpack.c.bf16 %v1462, %v1462
      %v1511 = vpack.c.bf16 %v1469, %v1469
      %v1512 = vpack.c.bf16 %v1476, %v1476
      %v1513 = vpack.c.bf16 %v1483, %v1483
      %v1514 = vpack.c.bf16 %v1490, %v1490
      %v1515 = vpack.c.bf16 %v1497, %v1497
      %v1516 = vpack.c.bf16 %v1504, %v1504
      %v1517 = vld [vmem:[%s2 + $0x9] sm:$0x1]
      %v1518 = vlaneseq
      %v1519 = vshrl.u32 %v1518, 7
      %v1520 = vsub.s32 0, %v1519
      %v1521 = vrot.slane %v1517, %v1520
      %v1530 = vunpack.c.l.b16 %v1509
      %v1531 = vunpack.c.l.b16 %v1510
      %v1532 = vunpack.c.l.b16 %v1511
      %v1533 = vunpack.c.l.b16 %v1512
      %v1534 = vunpack.c.l.b16 %v1513
      %v1535 = vunpack.c.l.b16 %v1514
      %v1536 = vunpack.c.l.b16 %v1515
      %v1537 = vunpack.c.l.b16 %v1516
      %v1538 = vsel %vm727, %v1531, %v1530
      %v1539 = vsel %vm729, %v1532, %v1538
      %v1540 = vsel %vm731, %v1533, %v1539
      %v1541 = vsel %vm733, %v1534, %v1540
      %v1542 = vsel %vm735, %v1535, %v1541
      %v1543 = vsel %vm737, %v1536, %v1542
      %v1544 = vsel %vm739, %v1537, %v1543
      %v1545 = vpack.c.b16 %v1544, %v1544
      %v1550 = vunpack.c.l.b16 %v1505
      %v1551 = vunpack.c.l.b16 %v1506
      %v1552 = vunpack.c.l.b16 %v1507
      %v1553 = vunpack.c.l.b16 %v1508
      %v1554 = vpack.c.b16 %v1551, %v1550
      %v1555 = vpack.c.b16 %v1553, %v1552
      %v1559 = vsel %vm206, %v1545, 0
      %1561 = vmatprep.subr.bf16.mxu0 0
      %1562 = vmatpush1.bf16.msra.mxu0 0
      %1563 = vmatprep.subr.bf16.mxu0 0
      %1564 = vmatpush1.bf16.msra.mxu0 0
      %1565 = vmatprep.subr.bf16.mxu0 0
      %1566 = vmatpush1.bf16.msra.mxu0 0
      %1567 = vmatprep.subr.bf16.mxu0 0
      %1568 = vmatpush1.bf16.msra.mxu0 0
      %1569 = vmatprep.subr.bf16.mxu0 0
      %1570 = vmatpush1.bf16.msra.mxu0 0
      %1571 = vmatprep.subr.bf16.mxu0 0
      %1572 = vmatpush1.bf16.msra.mxu0 0
      %1573 = vmatprep.subr.bf16.mxu0 0
      %1574 = vmatpush1.bf16.msra.mxu0 %v1555
      %1575 = vmatprep.subr.bf16.mxu0 0
      %1576 = vmatpush1.bf16.msra.mxu0 %v1554
      %1577 = vmatprep.subr.bf16.mxu0 0
      %1578 = vmatpush2.bf16.msra.mxu0 0
      %1579 = vmatprep.subr.bf16.mxu0 0
      %1580 = vmatpush2.bf16.msra.mxu0 0
      %1581 = vmatprep.subr.bf16.mxu0 0
      %1582 = vmatpush2.bf16.msra.mxu0 0
      %1583 = vmatprep.subr.bf16.mxu0 0
      %1584 = vmatpush2.bf16.msra.mxu0 0
      %1585 = vmatprep.subr.bf16.mxu0 0
      %1586 = vmatpush2.bf16.msra.mxu0 0
      %1587 = vmatprep.subr.bf16.mxu0 0
      %1588 = vmatpush2.bf16.msra.mxu0 0
      %1589 = vmatprep.subr.bf16.mxu0 0
      %1590 = vmatpush2.bf16.msra.mxu0 0
      %1591 = vmatprep.subr.bf16.mxu0 0
      %1592 = vmatpush2.bf16.msra.mxu0 0
      %1593 = vmatprep.mubr.bf16.mxu0 0
      %1594 = vmatmul.mubr.bf16.gmra.mxu0 %v1559
      %v1595 = vpop.f32.mrf.mxu0
      %v1596 = vadd.f32 %v1521, %v1595
      %v1597 = vpop.f32.mrf.mxu0
      %v1598 = vpop.f32.mrf.mxu0
      %v1599 = vpop.f32.mrf.mxu0
      %1600 = vdwg.mxu0
      %v1601 = vadd.f32 %v1029, %v1596
      %v1602 = vld [vmem:[%s2 + $0xa] sm:$0x1]
      %v1603 = vld [vmem:[%s2 + $0xb] sm:$0x1]
      %v1604 = vsel %vm206, %v1601, 0.0
      %1605 = vadd.xlane.f32.xlu0 %v1604
      %v1606 = vpop.xlane.xlu0 %1605
      %v1607 = vmul.f32 %v1606, %v803
      %v1608 = vmul.f32 %v1601, %v1601
      %v1609 = vsel %vm206, %v1608, 0.0
      %1610 = vadd.xlane.f32.xlu0 %v1609
      %v1611 = vpop.xlane.xlu0 %1610
      %v1612 = vmul.f32 %v1611, %v803
      %v1613 = vmul.f32 %v1607, %v1607
      %v1614 = vsub.f32 %v1612, %v1613
      %v1615 = vsub.f32 %v1601, %v1607
      %v1616 = vadd.f32 %v1614, 1e-05
      %v1617 = vrsqrt.pop %v1616
      %v1618 = vmul.f32 %v1615, %v1617
      %v1619 = vlaneseq
      %v1620 = vshrl.u32 %v1619, 7
      %v1621 = vsub.s32 0, %v1620
      %v1622 = vrot.slane %v1602, %v1621
      %v1623 = vmul.f32 %v1618, %v1622
      %v1624 = vlaneseq
      %v1625 = vshrl.u32 %v1624, 7
      %v1626 = vsub.s32 0, %v1625
      %v1627 = vrot.slane %v1603, %v1626
      %v1628 = vadd.f32 %v1623, %v1627
      %v1629 = vld [vmem:[%s1 + $0x90] sm:$0xf]
      %v1630 = vld [vmem:[%s1 + $0x94] sm:$0xf]
      %v1631 = vld [vmem:[%s1 + $0x98] sm:$0xf]
      %v1632 = vld [vmem:[%s1 + $0x9c] sm:$0xf]
      %v1633 = vpack.c.bf16 %v1628, %v1628
      %v1634 = vld [vmem:[%s2 + $0xc] sm:$0x1]
      %v1635 = vlaneseq
      %v1636 = vshrl.u32 %v1635, 7
      %v1637 = vsub.s32 0, %v1636
      %v1638 = vrot.slane %v1634, %v1637
      %v1643 = vunpack.c.l.b16 %v1629
      %v1644 = vunpack.c.l.b16 %v1630
      %v1645 = vunpack.c.l.b16 %v1631
      %v1646 = vunpack.c.l.b16 %v1632
      %v1647 = vpack.c.b16 %v1644, %v1643
      %v1648 = vpack.c.b16 %v1646, %v1645
      %v1652 = vsel %vm206, %v1633, 0
      %1654 = vmatprep.subr.bf16.mxu0 0
      %1655 = vmatpush1.bf16.msra.mxu0 0
      %1656 = vmatprep.subr.bf16.mxu0 0
      %1657 = vmatpush1.bf16.msra.mxu0 0
      %1658 = vmatprep.subr.bf16.mxu0 0
      %1659 = vmatpush1.bf16.msra.mxu0 0
      %1660 = vmatprep.subr.bf16.mxu0 0
      %1661 = vmatpush1.bf16.msra.mxu0 0
      %1662 = vmatprep.subr.bf16.mxu0 0
      %1663 = vmatpush1.bf16.msra.mxu0 0
      %1664 = vmatprep.subr.bf16.mxu0 0
      %1665 = vmatpush1.bf16.msra.mxu0 0
      %1666 = vmatprep.subr.bf16.mxu0 0
      %1667 = vmatpush1.bf16.msra.mxu0 %v1648
      %1668 = vmatprep.subr.bf16.mxu0 0
      %1669 = vmatpush1.bf16.msra.mxu0 %v1647
      %1670 = vmatprep.subr.bf16.mxu0 0
      %1671 = vmatpush2.bf16.msra.mxu0 0
      %1672 = vmatprep.subr.bf16.mxu0 0
      %1673 = vmatpush2.bf16.msra.mxu0 0
      %1674 = vmatprep.subr.bf16.mxu0 0
      %1675 = vmatpush2.bf16.msra.mxu0 0
      %1676 = vmatprep.subr.bf16.mxu0 0
      %1677 = vmatpush2.bf16.msra.mxu0 0
      %1678 = vmatprep.subr.bf16.mxu0 0
      %1679 = vmatpush2.bf16.msra.mxu0 0
      %1680 = vmatprep.subr.bf16.mxu0 0
      %1681 = vmatpush2.bf16.msra.mxu0 0
      %1682 = vmatprep.subr.bf16.mxu0 0
      %1683 = vmatpush2.bf16.msra.mxu0 0
      %1684 = vmatprep.subr.bf16.mxu0 0
      %1685 = vmatpush2.bf16.msra.mxu0 0
      %1686 = vmatprep.mubr.bf16.mxu0 0
      %1687 = vmatmul.mubr.bf16.gmra.mxu0 %v1652
      %v1688 = vpop.f32.mrf.mxu0
      %v1689 = vadd.f32 %v1638, %v1688
      %v1690 = vpop.f32.mrf.mxu0
      %v1691 = vpop.f32.mrf.mxu0
      %v1692 = vpop.f32.mrf.mxu0
      %1693 = vdwg.mxu0
      %v1694 = vmax.f32 %v1689, 0.0
      %v1695 = vld [vmem:[%s1 + $0xa0] sm:$0xf]
      %v1696 = vld [vmem:[%s1 + $0xa4] sm:$0xf]
      %v1697 = vld [vmem:[%s1 + $0xa8] sm:$0xf]
      %v1698 = vld [vmem:[%s1 + $0xac] sm:$0xf]
      %v1699 = vld [vmem:[%s1 + $0xb0] sm:$0xf]
      %v1700 = vld [vmem:[%s1 + $0xb4] sm:$0xf]
      %v1701 = vld [vmem:[%s1 + $0xb8] sm:$0xf]
      %v1702 = vld [vmem:[%s1 + $0xbc] sm:$0xf]
      %v1703 = vld [vmem:[%s1 + $0xc0] sm:$0xf]
      %v1704 = vld [vmem:[%s1 + $0xc4] sm:$0xf]
      %v1705 = vld [vmem:[%s1 + $0xc8] sm:$0xf]
      %v1706 = vld [vmem:[%s1 + $0xcc] sm:$0xf]
      %v1707 = vld [vmem:[%s1 + $0xd0] sm:$0xf]
      %v1708 = vld [vmem:[%s1 + $0xd4] sm:$0xf]
      %v1709 = vld [vmem:[%s1 + $0xd8] sm:$0xf]
      %v1710 = vld [vmem:[%s1 + $0xdc] sm:$0xf]
      %v1711 = vpack.c.bf16 %v1694, %v1694
      %v1712 = vld [vmem:[%s2 + $0xd] sm:$0x1]
      %v1713 = vlaneseq
      %v1714 = vshrl.u32 %v1713, 7
      %v1715 = vsub.s32 0, %v1714
      %v1716 = vrot.slane %v1712, %v1715
      %v1733 = vunpack.c.l.b16 %v1695
      %v1734 = vunpack.c.l.b16 %v1696
      %v1735 = vunpack.c.l.b16 %v1697
      %v1736 = vunpack.c.l.b16 %v1698
      %v1737 = vunpack.c.l.b16 %v1699
      %v1738 = vunpack.c.l.b16 %v1700
      %v1739 = vunpack.c.l.b16 %v1701
      %v1740 = vunpack.c.l.b16 %v1702
      %v1741 = vunpack.c.l.b16 %v1703
      %v1742 = vunpack.c.l.b16 %v1704
      %v1743 = vunpack.c.l.b16 %v1705
      %v1744 = vunpack.c.l.b16 %v1706
      %v1745 = vunpack.c.l.b16 %v1707
      %v1746 = vunpack.c.l.b16 %v1708
      %v1747 = vunpack.c.l.b16 %v1709
      %v1748 = vunpack.c.l.b16 %v1710
      %v1749 = vpack.c.b16 %v1734, %v1733
      %v1750 = vpack.c.b16 %v1736, %v1735
      %v1751 = vpack.c.b16 %v1738, %v1737
      %v1752 = vpack.c.b16 %v1740, %v1739
      %v1753 = vpack.c.b16 %v1742, %v1741
      %v1754 = vpack.c.b16 %v1744, %v1743
      %v1755 = vpack.c.b16 %v1746, %v1745
      %v1756 = vpack.c.b16 %v1748, %v1747
      %1765 = vmatprep.subr.bf16.mxu0 0
      %1766 = vmatpush1.bf16.msra.mxu0 %v1756
      %1767 = vmatprep.subr.bf16.mxu0 0
      %1768 = vmatpush1.bf16.msra.mxu0 %v1755
      %1769 = vmatprep.subr.bf16.mxu0 0
      %1770 = vmatpush1.bf16.msra.mxu0 %v1754
      %1771 = vmatprep.subr.bf16.mxu0 0
      %1772 = vmatpush1.bf16.msra.mxu0 %v1753
      %1773 = vmatprep.subr.bf16.mxu0 0
      %1774 = vmatpush1.bf16.msra.mxu0 %v1752
      %1775 = vmatprep.subr.bf16.mxu0 0
      %1776 = vmatpush1.bf16.msra.mxu0 %v1751
      %1777 = vmatprep.subr.bf16.mxu0 0
      %1778 = vmatpush1.bf16.msra.mxu0 %v1750
      %1779 = vmatprep.subr.bf16.mxu0 0
      %1780 = vmatpush1.bf16.msra.mxu0 %v1749
      %1781 = vmatprep.subr.bf16.mxu0 0
      %1782 = vmatpush2.bf16.msra.mxu0 0
      %1783 = vmatprep.subr.bf16.mxu0 0
      %1784 = vmatpush2.bf16.msra.mxu0 0
      %1785 = vmatprep.subr.bf16.mxu0 0
      %1786 = vmatpush2.bf16.msra.mxu0 0
      %1787 = vmatprep.subr.bf16.mxu0 0
      %1788 = vmatpush2.bf16.msra.mxu0 0
      %1789 = vmatprep.subr.bf16.mxu0 0
      %1790 = vmatpush2.bf16.msra.mxu0 0
      %1791 = vmatprep.subr.bf16.mxu0 0
      %1792 = vmatpush2.bf16.msra.mxu0 0
      %1793 = vmatprep.subr.bf16.mxu0 0
      %1794 = vmatpush2.bf16.msra.mxu0 0
      %1795 = vmatprep.subr.bf16.mxu0 0
      %1796 = vmatpush2.bf16.msra.mxu0 0
      %1797 = vmatprep.mubr.bf16.mxu0 0
      %1798 = vmatmul.mubr.bf16.gmra.mxu0 %v1711
      %v1799 = vpop.f32.mrf.mxu0
      %v1800 = vadd.f32 %v1716, %v1799
      %v1801 = vpop.f32.mrf.mxu0
      %v1802 = vpop.f32.mrf.mxu0
      %v1803 = vpop.f32.mrf.mxu0
      %1804 = vdwg.mxu0
      %v1805 = vadd.f32 %v1628, %v1800
      %v1806 = vld [vmem:[%s2 + $0xe] sm:$0x1]
      %v1807 = vld [vmem:[%s2 + $0xf] sm:$0x1]
      %v1808 = vsel %vm206, %v1805, 0.0
      %1809 = vadd.xlane.f32.xlu0 %v1808
      %v1810 = vpop.xlane.xlu0 %1809
      %v1811 = vmul.f32 %v1810, %v803
      %v1812 = vmul.f32 %v1805, %v1805
      %v1813 = vsel %vm206, %v1812, 0.0
      %1814 = vadd.xlane.f32.xlu0 %v1813
      %v1815 = vpop.xlane.xlu0 %1814
      %v1816 = vmul.f32 %v1815, %v803
      %v1817 = vmul.f32 %v1811, %v1811
      %v1818 = vsub.f32 %v1816, %v1817
      %v1819 = vsub.f32 %v1805, %v1811
      %v1820 = vadd.f32 %v1818, 1e-05
      %v1821 = vrsqrt.pop %v1820
      %v1822 = vmul.f32 %v1819, %v1821
      %v1823 = vlaneseq
      %v1824 = vshrl.u32 %v1823, 7
      %v1825 = vsub.s32 0, %v1824
      %v1826 = vrot.slane %v1806, %v1825
      %v1827 = vmul.f32 %v1822, %v1826
      %v1828 = vlaneseq
      %v1829 = vshrl.u32 %v1828, 7
      %v1830 = vsub.s32 0, %v1829
      %v1831 = vrot.slane %v1807, %v1830
      %v1832 = vadd.f32 %v1827, %v1831
      %v1833 = vmul.f32 %v167, 0.2
      %v1834 = vadd.f32 %v1832, %v1833
      %v1835 = vld [vmem:[%s1 + $0xe0] sm:$0xf]
      %v1836 = vld [vmem:[%s1 + $0xe4] sm:$0xf]
      %v1837 = vld [vmem:[%s1 + $0xe8] sm:$0xf]
      %v1838 = vld [vmem:[%s1 + $0xec] sm:$0xf]
      %v1839 = vpack.c.bf16 %v1834, %v1834
      %v1840 = vld [vmem:[%s2 + $0x10] sm:$0x1]
      %v1841 = vlaneseq
      %v1842 = vshrl.u32 %v1841, 7
      %v1843 = vsub.s32 0, %v1842
      %v1844 = vrot.slane %v1840, %v1843
      %v1849 = vunpack.c.l.b16 %v1835
      %v1850 = vunpack.c.l.b16 %v1836
      %v1851 = vunpack.c.l.b16 %v1837
      %v1852 = vunpack.c.l.b16 %v1838
      %v1853 = vpack.c.b16 %v1850, %v1849
      %v1854 = vpack.c.b16 %v1852, %v1851
      %v1858 = vsel %vm206, %v1839, 0
      %1860 = vmatprep.subr.bf16.mxu0 0
      %1861 = vmatpush1.bf16.msra.mxu0 0
      %1862 = vmatprep.subr.bf16.mxu0 0
      %1863 = vmatpush1.bf16.msra.mxu0 0
      %1864 = vmatprep.subr.bf16.mxu0 0
      %1865 = vmatpush1.bf16.msra.mxu0 0
      %1866 = vmatprep.subr.bf16.mxu0 0
      %1867 = vmatpush1.bf16.msra.mxu0 0
      %1868 = vmatprep.subr.bf16.mxu0 0
      %1869 = vmatpush1.bf16.msra.mxu0 0
      %1870 = vmatprep.subr.bf16.mxu0 0
      %1871 = vmatpush1.bf16.msra.mxu0 0
      %1872 = vmatprep.subr.bf16.mxu0 0
      %1873 = vmatpush1.bf16.msra.mxu0 %v1854
      %1874 = vmatprep.subr.bf16.mxu0 0
      %1875 = vmatpush1.bf16.msra.mxu0 %v1853
      %1876 = vmatprep.subr.bf16.mxu0 0
      %1877 = vmatpush2.bf16.msra.mxu0 0
      %1878 = vmatprep.subr.bf16.mxu0 0
      %1879 = vmatpush2.bf16.msra.mxu0 0
      %1880 = vmatprep.subr.bf16.mxu0 0
      %1881 = vmatpush2.bf16.msra.mxu0 0
      %1882 = vmatprep.subr.bf16.mxu0 0
      %1883 = vmatpush2.bf16.msra.mxu0 0
      %1884 = vmatprep.subr.bf16.mxu0 0
      %1885 = vmatpush2.bf16.msra.mxu0 0
      %1886 = vmatprep.subr.bf16.mxu0 0
      %1887 = vmatpush2.bf16.msra.mxu0 0
      %1888 = vmatprep.subr.bf16.mxu0 0
      %1889 = vmatpush2.bf16.msra.mxu0 0
      %1890 = vmatprep.subr.bf16.mxu0 0
      %1891 = vmatpush2.bf16.msra.mxu0 0
      %1892 = vmatprep.mubr.bf16.mxu0 0
      %1893 = vmatmul.mubr.bf16.gmra.mxu0 %v1858
      %v1894 = vpop.f32.mrf.mxu0
      %v1895 = vadd.f32 %v1844, %v1894
      %v1896 = vpop.f32.mrf.mxu0
      %v1897 = vpop.f32.mrf.mxu0
      %v1898 = vpop.f32.mrf.mxu0
      %1899 = vdwg.mxu0
      %v1900 = vld [vmem:[%s2 + $0x12] sm:$0x1]
      %vm1901 = vcmp.ge.f32.partialorder %v1895, 0.0
      %s1903 = vtos %v1900
      %v1904 = vstv %s1903
      %v1906 = vmul.f32 %v1904, %v1895
      %v1907 = vsel %vm1901, %v1895, %v1906
      %v1908 = vld [vmem:[%s1 + $0xf0] sm:$0xf]
      %v1909 = vld [vmem:[%s1 + $0xf4] sm:$0xf]
      %v1910 = vld [vmem:[%s1 + $0xf8] sm:$0xf]
      %v1911 = vld [vmem:[%s1 + $0xfc] sm:$0xf]
      %v1912 = vld [vmem:[%s1 + $0x100] sm:$0xf]
      %v1913 = vld [vmem:[%s1 + $0x104] sm:$0xf]
      %v1914 = vld [vmem:[%s1 + $0x108] sm:$0xf]
      %v1915 = vld [vmem:[%s1 + $0x10c] sm:$0xf]
      %v1916 = vpack.c.bf16 %v1907, %v1907
      %v1917 = vld [vmem:[%s2 + $0x11] sm:$0x1]
      %v1918 = vlaneseq
      %v1919 = vshrl.u32 %v1918, 7
      %v1920 = vsub.s32 0, %v1919
      %v1921 = vrot.slane %v1917, %v1920
      %v1930 = vunpack.c.l.b16 %v1908
      %v1931 = vunpack.c.l.b16 %v1909
      %v1932 = vunpack.c.l.b16 %v1910
      %v1933 = vunpack.c.l.b16 %v1911
      %v1934 = vunpack.c.l.b16 %v1912
      %v1935 = vunpack.c.l.b16 %v1913
      %v1936 = vunpack.c.l.b16 %v1914
      %v1937 = vunpack.c.l.b16 %v1915
      %v1938 = vpack.c.b16 %v1931, %v1930
      %v1939 = vpack.c.b16 %v1933, %v1932
      %v1940 = vpack.c.b16 %v1935, %v1934
      %v1941 = vpack.c.b16 %v1937, %v1936
      %vm1946 = vcmask 523264
      %v1948 = vsel %vm1946, %v1916, 0
      %1950 = vmatprep.subr.bf16.mxu0 0
      %1951 = vmatpush1.bf16.msra.mxu0 0
      %1952 = vmatprep.subr.bf16.mxu0 0
      %1953 = vmatpush1.bf16.msra.mxu0 0
      %1954 = vmatprep.subr.bf16.mxu0 0
      %1955 = vmatpush1.bf16.msra.mxu0 0
      %1956 = vmatprep.subr.bf16.mxu0 0
      %1957 = vmatpush1.bf16.msra.mxu0 0
      %1958 = vmatprep.subr.bf16.mxu0 0
      %1959 = vmatpush1.bf16.msra.mxu0 %v1941
      %1960 = vmatprep.subr.bf16.mxu0 0
      %1961 = vmatpush1.bf16.msra.mxu0 %v1940
      %1962 = vmatprep.subr.bf16.mxu0 0
      %1963 = vmatpush1.bf16.msra.mxu0 %v1939
      %1964 = vmatprep.subr.bf16.mxu0 0
      %1965 = vmatpush1.bf16.msra.mxu0 %v1938
      %1966 = vmatprep.subr.bf16.mxu0 0
      %1967 = vmatpush2.bf16.msra.mxu0 0
      %1968 = vmatprep.subr.bf16.mxu0 0
      %1969 = vmatpush2.bf16.msra.mxu0 0
      %1970 = vmatprep.subr.bf16.mxu0 0
      %1971 = vmatpush2.bf16.msra.mxu0 0
      %1972 = vmatprep.subr.bf16.mxu0 0
      %1973 = vmatpush2.bf16.msra.mxu0 0
      %1974 = vmatprep.subr.bf16.mxu0 0
      %1975 = vmatpush2.bf16.msra.mxu0 0
      %1976 = vmatprep.subr.bf16.mxu0 0
      %1977 = vmatpush2.bf16.msra.mxu0 0
      %1978 = vmatprep.subr.bf16.mxu0 0
      %1979 = vmatpush2.bf16.msra.mxu0 0
      %1980 = vmatprep.subr.bf16.mxu0 0
      %1981 = vmatpush2.bf16.msra.mxu0 0
      %1982 = vmatprep.mubr.bf16.mxu0 0
      %1983 = vmatmul.mubr.bf16.gmra.mxu0 %v1948
      %v1984 = vpop.f32.mrf.mxu0
      %v1985 = vadd.f32 %v1921, %v1984
      %v1986 = vpop.f32.mrf.mxu0
      %v1987 = vpop.f32.mrf.mxu0
      %v1988 = vpop.f32.mrf.mxu0
      %1989 = vdwg.mxu0
      %1990 = vst [vmem:[%s165] sm:$0xff] %v1985
      %p1991 = scmp.lt.s32.totalorder %s14, 1
      %s1992 = scalar_select %p1991, %s14, 1
      %s1993 = smul.addr %s1992, 8
      %s1994 = scalar_lea.vmem %s3, %s1993
      // Predicated region
      $region33: #{ms2_forward_pallas.1} parent=31 // pred_check
        %p1995 = pneg %p100
      $region34: #{ms2_forward_pallas.1} parent=31 // pred_check_branch
        %1997 = sbr.rel (%p1995) target = $region36
      $region35: #{ms2_forward_pallas.1} parent=31 // pred_region
        _
      $region36: #{ms2_forward_pallas.1} parent=31 // pred_fallthru
        _
    $region32: #{ms2_forward_pallas.1} parent=5 // pred_fallthru
      _
    %p1998 = scmp.le.s32.totalorder 2, %s9
    // Predicated region
    $region37: #{ms2_forward_pallas.1} parent=5 // pred_check
      %p1999 = pneg %p1998
    $region38: #{ms2_forward_pallas.1} parent=5 // pred_check_branch
      %2001 = sbr.rel (%p1999) target = $region40
    $region39: #{ms2_forward_pallas.1} parent=5 // pred_region
      %s2002 = ssub.s32 %s9, 2
      // Predicated region
      $region41: #{ms2_forward_pallas.1} parent=39 // pred_check
        %p2003 = pneg %p106
      $region42: #{ms2_forward_pallas.1} parent=39 // pred_check_branch
        %2005 = sbr.rel (%p2003) target = $region44
      $region43: #{ms2_forward_pallas.1} parent=39 // pred_region
        %p2006 = scmp.lt.s32.totalorder %s15, 1
        %s2007 = scalar_select %p2006, %s15, 1
        %s2008 = smul.addr %s2007, 8
        %s2009 = scalar_lea.vmem %s3, %s2008
      $region44: #{ms2_forward_pallas.1} parent=39 // pred_fallthru
        _
    $region40: #{ms2_forward_pallas.1} parent=5 // pred_fallthru
      _
  $region6: #{ms2_forward_pallas.1} parent=0 // loop_footer
    %s13 = sadd.s32 1, %s9
  $region7: #{ms2_forward_pallas.1} parent=0 // loop_footer_branch
    %8 = sbr.rel target = $region3
  $region8: #{ms2_forward_pallas.1} parent=0 // loop_exit
    _

</llo_original>
